<compile_context>
chip_gen: v5e
topology: v5e:2x2
jax: 0.10.0
libtpu: 0.0.40
codegen_flags: <defaults>
</compile_context>

<pallas_src>
import functools

import jax
import jax.numpy as jnp
from jax.experimental import pallas as pl
from jax.experimental.pallas import tpu as pltpu


# ---------------------------------------------------------------------------
# Pallas kernel
# ---------------------------------------------------------------------------
def _attention_kernel(xt_ref, xf_ref, wq_ref, bq_ref, wkv_ref, bkv_ref,
                      wo_ref, bo_ref, o_ref, *, heads, dim_head, compute_dtype):
    f32 = jnp.float32
    exact = jnp.dtype(compute_dtype) == jnp.dtype(jnp.float32)
    D = dim_head
    HD = heads * dim_head

    xt = xt_ref[0]                     # (C, TQ) f32 — query tile / residual
    xf = xf_ref[0]                     # (C, S)  f32 — all tokens (for K/V)

    # Q projection for this query tile (attention scale pre-folded into wq/bq).
    q = jnp.dot(wq_ref[...], xt.astype(compute_dtype),
                preferred_element_type=f32) + bq_ref[...]          # (HD, TQ) f32
    # K/V projection over all S tokens.
    kv = jnp.dot(wkv_ref[...], xf.astype(compute_dtype),
                 preferred_element_type=f32) + bkv_ref[...]        # (2HD, S) f32

    qT = q.T.astype(compute_dtype)                                 # (TQ, HD)
    k = kv[:HD].astype(compute_dtype)                              # (HD, S)
    v = kv[HD:].astype(compute_dtype)                              # (HD, S)
    wo = wo_ref[...]                                               # (C, HD)

    # Output accumulator starts with proj_out bias + residual (both f32).
    acc = bo_ref[...] + xt                                         # (C, TQ) f32

    for h in range(heads):             # static, tiny head count
        qh = qT[:, h * D:(h + 1) * D]                              # (TQ, D)
        kh = k[h * D:(h + 1) * D, :]                               # (D, S)
        vh = v[h * D:(h + 1) * D, :]                               # (D, S)

        # logits[s, t] = sum_d q[s,d] * k[d,t]   (canonical matmul, K = D)
        lg = jnp.dot(qh, kh, preferred_element_type=f32)           # (TQ, S) f32

        # Numerically stable softmax over keys (lane axis).
        m = jnp.max(lg, axis=-1, keepdims=True)
        p = jnp.exp(lg - m)
        l = jnp.sum(p, axis=-1, keepdims=True)
        if exact:
            p = p / l                                              # f32 reference path
        else:
            p = p * pl.reciprocal(l, approx=True)                  # EUP reciprocal

        # res_h[d, s] = sum_t v[d,t] * p[s,t]   (A·B^T form, contraction on lanes)
        rh = jax.lax.dot_general(vh, p.astype(compute_dtype),
                                 (((1,), (1,)), ((), ())),
                                 preferred_element_type=f32)       # (D, TQ) f32

        # This head's contribution to proj_out.
        acc = acc + jnp.dot(wo[:, h * D:(h + 1) * D], rh.astype(compute_dtype),
                            preferred_element_type=f32)            # (C, TQ) f32

    o_ref[0] = acc                                                 # lane-dense store


# ---------------------------------------------------------------------------
# Wrapper
# ---------------------------------------------------------------------------
@functools.partial(jax.jit, static_argnames=("heads", "dim_head", "compute_dtype"))
def attention_block(x_nchw, wqkv, bqkv, wo, bo, *, heads, dim_head,
                    compute_dtype=jnp.bfloat16):
    """Forward pass of AttentionBlock. x_nchw: (B, C, H, W) float32."""
    B, C, H, W = x_nchw.shape
    S = H * W
    D = dim_head
    HD = heads * dim_head
    scale = float(dim_head) ** -0.5

    # 'b c h w -> b c (h w)' — pure reshape, NO transpose (tokens land on lanes).
    x_bcs = x_nchw.reshape(B, C, S).astype(jnp.float32)

    # torch qkv features are ordered f = h*3D + t*D + d (t: 0=q,1=k,2=v).
    # Permute the projection ROWS to [ Q(all heads) | K(all heads) | V(all heads) ],
    # head-major within each section, so q/k/v are contiguous sublane slices.
    perm = []
    for t in range(3):
        for h in range(heads):
            base = h * 3 * D + t * D
            perm.extend(range(base, base + D))
    perm = jnp.asarray(perm, dtype=jnp.int32)

    wqkv_p = wqkv[perm, :]                                        # (3HD, C)
    bqkv_p = bqkv[perm]                                           # (3HD,)

    # Fold the attention scale into the Q weight/bias (trace-time, free).
    wq = (wqkv_p[:HD] * scale).astype(compute_dtype)              # (HD, C)
    bq = (bqkv_p[:HD] * scale).reshape(HD, 1).astype(jnp.float32)
    wkv = wqkv_p[HD:].astype(compute_dtype)                       # (2HD, C)
    bkv = bqkv_p[HD:].reshape(2 * HD, 1).astype(jnp.float32)
    wo_c = wo.astype(compute_dtype)                               # (C, HD)
    bo_c = bo.reshape(C, 1).astype(jnp.float32)

    # Query tile: lane-aligned if possible, else a single full-S tile.
    TQ = 128 if (S % 128 == 0) else S
    grid = (B, S // TQ)

    kernel = functools.partial(_attention_kernel, heads=heads, dim_head=dim_head,
                               compute_dtype=compute_dtype)

    out_bcs = pl.pallas_call(
        kernel,
        out_shape=jax.ShapeDtypeStruct((B, C, S), jnp.float32),
        grid_spec=pltpu.PrefetchScalarGridSpec(
            num_scalar_prefetch=0,
            grid=grid,
            in_specs=[
                pl.BlockSpec((1, C, TQ), lambda b, qi: (b, 0, qi)),   # x query tile
                pl.BlockSpec((1, C, S), lambda b, qi: (b, 0, 0)),     # x all tokens
                pl.BlockSpec((HD, C), lambda b, qi: (0, 0)),          # Wq (scaled)
                pl.BlockSpec((HD, 1), lambda b, qi: (0, 0)),          # bq (scaled)
                pl.BlockSpec((2 * HD, C), lambda b, qi: (0, 0)),      # Wkv
                pl.BlockSpec((2 * HD, 1), lambda b, qi: (0, 0)),      # bkv
                pl.BlockSpec((C, HD), lambda b, qi: (0, 0)),          # Wo
                pl.BlockSpec((C, 1), lambda b, qi: (0, 0)),           # bo
            ],
            out_specs=pl.BlockSpec((1, C, TQ), lambda b, qi: (b, 0, qi)),
        ),
        compiler_params=pltpu.CompilerParams(
            dimension_semantics=("parallel", "parallel"),
            # Explicit scoped-VMEM budget; ample here, leaves headroom on v7x (64 MiB).
            vmem_limit_bytes=32 * 1024 * 1024),
    )(x_bcs, x_bcs, wq, bq, wkv, bkv, wo_c, bo_c)

    # 'b c (h w) -> b c h w' — pure reshape, no transpose.
    return out_bcs.reshape(B, C, H, W)


# ---------------------------------------------------------------------------
# Pure-JAX reference (mirrors the torch forward exactly) for a sanity check.
# ---------------------------------------------------------------------------
def attention_block_ref(x_nchw, wqkv, bqkv, wo, bo, *, heads, dim_head):
    B, C, H, W = x_nchw.shape
    S = H * W
    x = jnp.transpose(x_nchw, (0, 2, 3, 1)).reshape(B, S, C)
    qkv = x @ wqkv.T + bqkv                                   # (B, S, 3*heads*dim_head)
    qkv = qkv.reshape(B, S, heads, 3 * dim_head)              # 'b s (h d) -> b s h d'
    q, k, v = jnp.split(qkv, 3, axis=-1)                      # chunk(3, dim=-1)
    w = jnp.einsum('bshd,bthd->bsth', q, k) * (float(dim_head) ** -0.5)
    w = jax.nn.softmax(w, axis=2)
    res = jnp.einsum('bsth,bthd->bshd', w, v).reshape(B, S, heads * dim_head)
    out = res @ wo.T + bo + x
    return jnp.transpose(out.reshape(B, H, W, C), (0, 3, 1, 2))


# ---------------------------------------------------------------------------
# Main
# ---------------------------------------------------------------------------
if __name__ == "__main__":
    # Small shapes: batch=2, dim=8, spatial 16x16 (S=256), heads=2, dim_head=4.
    B, DIM, HS, WS = 2, 8, 16, 16
    HEADS, DIM_HEAD = 2, 4

    key = jax.random.PRNGKey(0)
    kx, kw1, kb1, kw2, kb2 = jax.random.split(key, 5)

    x = jax.random.normal(kx, (B, DIM, HS, WS), dtype=jnp.float32)

    # nn.Linear(dim, heads*dim_head*3): weight (out, in), bias (out,)
    wqkv = jax.random.normal(kw1, (HEADS * DIM_HEAD * 3, DIM), jnp.float32) * 0.1
    bqkv = jax.random.normal(kb1, (HEADS * DIM_HEAD * 3,), jnp.float32) * 0.1
    # nn.Linear(heads*dim_head, dim)
    wo = jax.random.normal(kw2, (DIM, HEADS * DIM_HEAD), jnp.float32) * 0.1
    bo = jax.random.normal(kb2, (DIM,), jnp.float32) * 0.1

    ref = attention_block_ref(x, wqkv, bqkv, wo, bo, heads=HEADS, dim_head=DIM_HEAD)

    # f32 MXU path (exact softmax divide) — tight tolerance.
    out_f32 = attention_block(x, wqkv, bqkv, wo, bo, heads=HEADS,
                              dim_head=DIM_HEAD, compute_dtype=jnp.float32)
    out_f32 = jax.block_until_ready(out_f32)
    assert out_f32.shape == (B, DIM, HS, WS)
    assert jnp.allclose(out_f32, ref, atol=2e-3, rtol=2e-3), "f32 mismatch vs reference"

    # bf16 MXU operands (default fast path) — looser tolerance.
    out_bf16 = attention_block(x, wqkv, bqkv, wo, bo, heads=HEADS, dim_head=DIM_HEAD)
    out_bf16 = jax.block_until_ready(out_bf16)
    assert out_bf16.shape == (B, DIM, HS, WS)
    assert jnp.allclose(out_bf16, ref, atol=3e-2, rtol=3e-2), "bf16 mismatch vs reference"

    print("KERNEL_OK")
</pallas_src>

<mosaic_0001>
module attributes {stable_mosaic.version = 11 : i64} {
  func.func @_attention_kernel(%arg0: i32, %arg1: i32, %arg2: memref<1x8x128xf32, #tpu.memory_space<vmem>>, %arg3: memref<1x8x256xf32, #tpu.memory_space<vmem>>, %arg4: memref<8x8xf32, #tpu.memory_space<vmem>>, %arg5: memref<8x1xf32, #tpu.memory_space<vmem>>, %arg6: memref<16x8xf32, #tpu.memory_space<vmem>>, %arg7: memref<16x1xf32, #tpu.memory_space<vmem>>, %arg8: memref<8x8xf32, #tpu.memory_space<vmem>>, %arg9: memref<8x1xf32, #tpu.memory_space<vmem>>, %arg10: memref<1x8x128xf32, #tpu.memory_space<vmem>>) attributes {dimension_semantics = [#tpu.dimension_semantics<parallel>, #tpu.dimension_semantics<parallel>], iteration_bounds = array<i64: 2, 2>, scalar_prefetch = 0 : i64, scratch_operands = 0 : i64, tpu.core_type = #tpu.core_type<tc>, window_params = [{transform_indices = @transform_0, window_bounds = array<i64: 1, 8, 128>}, {transform_indices = @transform_1, window_bounds = array<i64: 1, 8, 256>}, {pipeline_mode = #tpu.pipeline_mode<synchronous>, transform_indices = @transform_2, window_bounds = array<i64: 8, 8>}, {pipeline_mode = #tpu.pipeline_mode<synchronous>, transform_indices = @transform_3, window_bounds = array<i64: 8, 1>}, {pipeline_mode = #tpu.pipeline_mode<synchronous>, transform_indices = @transform_4, window_bounds = array<i64: 16, 8>}, {pipeline_mode = #tpu.pipeline_mode<synchronous>, transform_indices = @transform_5, window_bounds = array<i64: 16, 1>}, {pipeline_mode = #tpu.pipeline_mode<synchronous>, transform_indices = @transform_6, window_bounds = array<i64: 8, 8>}, {pipeline_mode = #tpu.pipeline_mode<synchronous>, transform_indices = @transform_7, window_bounds = array<i64: 8, 1>}, {transform_indices = @transform_8, window_bounds = array<i64: 1, 8, 128>}]} {
    %c0 = arith.constant 0 : index
    %c0_0 = arith.constant 0 : index
    %c0_1 = arith.constant 0 : index
    %0 = vector.load %arg2[%c0, %c0_0, %c0_1] : memref<1x8x128xf32, #tpu.memory_space<vmem>>, vector<1x8x128xf32>
    %1 = vector.shape_cast %0 : vector<1x8x128xf32> to vector<8x128xf32>
    %c0_2 = arith.constant 0 : index
    %c0_3 = arith.constant 0 : index
    %c0_4 = arith.constant 0 : index
    %2 = vector.load %arg3[%c0_2, %c0_3, %c0_4] : memref<1x8x256xf32, #tpu.memory_space<vmem>>, vector<1x8x256xf32>
    %3 = vector.shape_cast %2 : vector<1x8x256xf32> to vector<8x256xf32>
    %c0_5 = arith.constant 0 : index
    %c0_6 = arith.constant 0 : index
    %4 = vector.load %arg4[%c0_5, %c0_6] : memref<8x8xf32, #tpu.memory_space<vmem>>, vector<8x8xf32>
    %cst = arith.constant dense<0.000000e+00> : vector<8x128xf32>
    %5 = tpu.matmul %4, %1, %cst {dimension_numbers = #tpu.dot_dimension_numbers<[1], [0], [0], [1], [0, 0, 1, 1], [], []>} : vector<8x8xf32>, vector<8x128xf32>, vector<8x128xf32> -> vector<8x128xf32>
    %c0_7 = arith.constant 0 : index
    %c0_8 = arith.constant 0 : index
    %6 = vector.load %arg5[%c0_7, %c0_8] : memref<8x1xf32, #tpu.memory_space<vmem>>, vector<8x1xf32>
    %7 = vector.broadcast %6 : vector<8x1xf32> to vector<8x128xf32>
    %8 = arith.addf %5, %7 : vector<8x128xf32>
    %c0_9 = arith.constant 0 : index
    %c0_10 = arith.constant 0 : index
    %9 = vector.load %arg6[%c0_9, %c0_10] : memref<16x8xf32, #tpu.memory_space<vmem>>, vector<16x8xf32>
    %cst_11 = arith.constant dense<0.000000e+00> : vector<16x256xf32>
    %10 = tpu.matmul %9, %3, %cst_11 {dimension_numbers = #tpu.dot_dimension_numbers<[1], [0], [0], [1], [0, 0, 1, 1], [], []>} : vector<16x8xf32>, vector<8x256xf32>, vector<16x256xf32> -> vector<16x256xf32>
    %c0_12 = arith.constant 0 : index
    %c0_13 = arith.constant 0 : index
    %11 = vector.load %arg7[%c0_12, %c0_13] : memref<16x1xf32, #tpu.memory_space<vmem>>, vector<16x1xf32>
    %12 = vector.broadcast %11 : vector<16x1xf32> to vector<16x256xf32>
    %13 = arith.addf %10, %12 : vector<16x256xf32>
    %14 = tpu.transpose %8, [1, 0] : vector<8x128xf32> -> vector<128x8xf32>
    %15 = vector.extract_strided_slice %13 {offsets = [0, 0], sizes = [8, 256], strides = [1, 1]} : vector<16x256xf32> to vector<8x256xf32>
    %16 = vector.extract_strided_slice %13 {offsets = [8, 0], sizes = [8, 256], strides = [1, 1]} : vector<16x256xf32> to vector<8x256xf32>
    %c0_14 = arith.constant 0 : index
    %c0_15 = arith.constant 0 : index
    %17 = vector.load %arg8[%c0_14, %c0_15] : memref<8x8xf32, #tpu.memory_space<vmem>>, vector<8x8xf32>
    %c0_16 = arith.constant 0 : index
    %c0_17 = arith.constant 0 : index
    %18 = vector.load %arg9[%c0_16, %c0_17] : memref<8x1xf32, #tpu.memory_space<vmem>>, vector<8x1xf32>
    %19 = vector.broadcast %18 : vector<8x1xf32> to vector<8x128xf32>
    %20 = arith.addf %19, %1 : vector<8x128xf32>
    %21 = vector.extract_strided_slice %14 {offsets = [0, 0], sizes = [128, 4], strides = [1, 1]} : vector<128x8xf32> to vector<128x4xf32>
    %22 = vector.extract_strided_slice %15 {offsets = [0, 0], sizes = [4, 256], strides = [1, 1]} : vector<8x256xf32> to vector<4x256xf32>
    %23 = vector.extract_strided_slice %16 {offsets = [0, 0], sizes = [4, 256], strides = [1, 1]} : vector<8x256xf32> to vector<4x256xf32>
    %cst_18 = arith.constant dense<0.000000e+00> : vector<128x256xf32>
    %24 = tpu.matmul %21, %22, %cst_18 {dimension_numbers = #tpu.dot_dimension_numbers<[1], [0], [0], [1], [0, 0, 1, 1], [], []>} : vector<128x4xf32>, vector<4x256xf32>, vector<128x256xf32> -> vector<128x256xf32>
    %cst_19 = arith.constant dense<0xFF800000> : vector<128xf32>
    %25 = vector.multi_reduction <maximumf>, %24, %cst_19 [1] : vector<128x256xf32> to vector<128xf32>
    %26 = vector.shape_cast %25 : vector<128xf32> to vector<128x1xf32>
    %27 = vector.broadcast %26 : vector<128x1xf32> to vector<128x256xf32>
    %28 = arith.subf %24, %27 : vector<128x256xf32>
    %29 = math.exp %28 : vector<128x256xf32>
    %cst_20 = arith.constant dense<0.000000e+00> : vector<128xf32>
    %30 = vector.multi_reduction <add>, %29, %cst_20 [1] : vector<128x256xf32> to vector<128xf32>
    %31 = vector.shape_cast %30 : vector<128xf32> to vector<128x1xf32>
    %32 = vector.broadcast %31 : vector<128x1xf32> to vector<128x256xf32>
    %33 = arith.divf %29, %32 : vector<128x256xf32>
    %cst_21 = arith.constant dense<0.000000e+00> : vector<4x128xf32>
    %34 = tpu.matmul %23, %33, %cst_21 {dimension_numbers = #tpu.dot_dimension_numbers<[1], [1], [0], [0], [0, 0, 1, 0], [], []>} : vector<4x256xf32>, vector<128x256xf32>, vector<4x128xf32> -> vector<4x128xf32>
    %35 = vector.extract_strided_slice %17 {offsets = [0, 0], sizes = [8, 4], strides = [1, 1]} : vector<8x8xf32> to vector<8x4xf32>
    %cst_22 = arith.constant dense<0.000000e+00> : vector<8x128xf32>
    %36 = tpu.matmul %35, %34, %cst_22 {dimension_numbers = #tpu.dot_dimension_numbers<[1], [0], [0], [1], [0, 0, 1, 1], [], []>} : vector<8x4xf32>, vector<4x128xf32>, vector<8x128xf32> -> vector<8x128xf32>
    %37 = arith.addf %20, %36 : vector<8x128xf32>
    %38 = vector.extract_strided_slice %14 {offsets = [0, 4], sizes = [128, 4], strides = [1, 1]} : vector<128x8xf32> to vector<128x4xf32>
    %39 = vector.extract_strided_slice %15 {offsets = [4, 0], sizes = [4, 256], strides = [1, 1]} : vector<8x256xf32> to vector<4x256xf32>
    %40 = vector.extract_strided_slice %16 {offsets = [4, 0], sizes = [4, 256], strides = [1, 1]} : vector<8x256xf32> to vector<4x256xf32>
    %cst_23 = arith.constant dense<0.000000e+00> : vector<128x256xf32>
    %41 = tpu.matmul %38, %39, %cst_23 {dimension_numbers = #tpu.dot_dimension_numbers<[1], [0], [0], [1], [0, 0, 1, 1], [], []>} : vector<128x4xf32>, vector<4x256xf32>, vector<128x256xf32> -> vector<128x256xf32>
    %cst_24 = arith.constant dense<0xFF800000> : vector<128xf32>
    %42 = vector.multi_reduction <maximumf>, %41, %cst_24 [1] : vector<128x256xf32> to vector<128xf32>
    %43 = vector.shape_cast %42 : vector<128xf32> to vector<128x1xf32>
    %44 = vector.broadcast %43 : vector<128x1xf32> to vector<128x256xf32>
    %45 = arith.subf %41, %44 : vector<128x256xf32>
    %46 = math.exp %45 : vector<128x256xf32>
    %cst_25 = arith.constant dense<0.000000e+00> : vector<128xf32>
    %47 = vector.multi_reduction <add>, %46, %cst_25 [1] : vector<128x256xf32> to vector<128xf32>
    %48 = vector.shape_cast %47 : vector<128xf32> to vector<128x1xf32>
    %49 = vector.broadcast %48 : vector<128x1xf32> to vector<128x256xf32>
    %50 = arith.divf %46, %49 : vector<128x256xf32>
    %cst_26 = arith.constant dense<0.000000e+00> : vector<4x128xf32>
    %51 = tpu.matmul %40, %50, %cst_26 {dimension_numbers = #tpu.dot_dimension_numbers<[1], [1], [0], [0], [0, 0, 1, 0], [], []>} : vector<4x256xf32>, vector<128x256xf32>, vector<4x128xf32> -> vector<4x128xf32>
    %52 = vector.extract_strided_slice %17 {offsets = [0, 4], sizes = [8, 4], strides = [1, 1]} : vector<8x8xf32> to vector<8x4xf32>
    %cst_27 = arith.constant dense<0.000000e+00> : vector<8x128xf32>
    %53 = tpu.matmul %52, %51, %cst_27 {dimension_numbers = #tpu.dot_dimension_numbers<[1], [0], [0], [1], [0, 0, 1, 1], [], []>} : vector<8x4xf32>, vector<4x128xf32>, vector<8x128xf32> -> vector<8x128xf32>
    %54 = arith.addf %37, %53 : vector<8x128xf32>
    %c0_28 = arith.constant 0 : index
    %c0_29 = arith.constant 0 : index
    %c0_30 = arith.constant 0 : index
    %55 = vector.load %arg10[%c0_28, %c0_29, %c0_30] : memref<1x8x128xf32, #tpu.memory_space<vmem>>, vector<1x8x128xf32>
    %56 = vector.shape_cast %55 : vector<1x8x128xf32> to vector<8x128xf32>
    %57 = vector.shape_cast %54 : vector<8x128xf32> to vector<1x8x128xf32>
    tpu.vector_store %arg10[%c0_28, %c0_29, %c0_30], %57 {strides = array<i32>} : memref<1x8x128xf32, #tpu.memory_space<vmem>>, vector<1x8x128xf32>,
    return
  }
  func.func @transform_0(%arg0: i32, %arg1: i32) -> (i32, i32, i32) {
    %c0_i32 = arith.constant 0 : i32
    %c0_i32_0 = arith.constant 0 : i32
    return %arg0, %c0_i32, %arg1 : i32, i32, i32
  }
  func.func @transform_1(%arg0: i32, %arg1: i32) -> (i32, i32, i32) {
    %c0_i32 = arith.constant 0 : i32
    %c0_i32_0 = arith.constant 0 : i32
    %c0_i32_1 = arith.constant 0 : i32
    return %arg0, %c0_i32, %c0_i32_0 : i32, i32, i32
  }
  func.func @transform_2(%arg0: i32, %arg1: i32) -> (i32, i32) {
    %c0_i32 = arith.constant 0 : i32
    %c0_i32_0 = arith.constant 0 : i32
    %c0_i32_1 = arith.constant 0 : i32
    return %c0_i32, %c0_i32_0 : i32, i32
  }
  func.func @transform_3(%arg0: i32, %arg1: i32) -> (i32, i32) {
    %c0_i32 = arith.constant 0 : i32
    %c0_i32_0 = arith.constant 0 : i32
    %c0_i32_1 = arith.constant 0 : i32
    return %c0_i32, %c0_i32_0 : i32, i32
  }
  func.func @transform_4(%arg0: i32, %arg1: i32) -> (i32, i32) {
    %c0_i32 = arith.constant 0 : i32
    %c0_i32_0 = arith.constant 0 : i32
    %c0_i32_1 = arith.constant 0 : i32
    return %c0_i32, %c0_i32_0 : i32, i32
  }
  func.func @transform_5(%arg0: i32, %arg1: i32) -> (i32, i32) {
    %c0_i32 = arith.constant 0 : i32
    %c0_i32_0 = arith.constant 0 : i32
    %c0_i32_1 = arith.constant 0 : i32
    return %c0_i32, %c0_i32_0 : i32, i32
  }
  func.func @transform_6(%arg0: i32, %arg1: i32) -> (i32, i32) {
    %c0_i32 = arith.constant 0 : i32
    %c0_i32_0 = arith.constant 0 : i32
    %c0_i32_1 = arith.constant 0 : i32
    return %c0_i32, %c0_i32_0 : i32, i32
  }
  func.func @transform_7(%arg0: i32, %arg1: i32) -> (i32, i32) {
    %c0_i32 = arith.constant 0 : i32
    %c0_i32_0 = arith.constant 0 : i32
    %c0_i32_1 = arith.constant 0 : i32
    return %c0_i32, %c0_i32_0 : i32, i32
  }
  func.func @transform_8(%arg0: i32, %arg1: i32) -> (i32, i32, i32) {
    %c0_i32 = arith.constant 0 : i32
    %c0_i32_0 = arith.constant 0 : i32
    return %arg0, %c0_i32, %arg1 : i32, i32, i32
  }
}

</mosaic_0001>

<llo_original>
// kernel: attention_block.1
$region0: #{attention_block.1}
  #allocation0 [shape = 'u32[]', space=smem, size = 0x4, offset = 0x4, fixed_abs, tag = 'smem constant byte address 0x4 - core index']
  #allocation1 [shape = 'u32[72,128]{1,0:T(1,128)}', space=vmem, size = 0x9000, scoped, tag = 'internal scratch']
  %s0 = inlined_call_operand.vmem [shape: f32[2,8,256], index: 0, kind: input, shape index: {}, may-alias: {0,1}]
  %s1 = inlined_call_operand.vmem [shape: f32[2,8,256], index: 1, kind: input, shape index: {}, may-alias: {0,1}]
  %s2 = inlined_call_operand.vmem [shape: f32[8,8], index: 2, kind: input, shape index: {}]
  %s3 = inlined_call_operand.vmem [shape: f32[8,1], index: 3, kind: input, shape index: {}]
  %s4 = inlined_call_operand.vmem [shape: f32[16,8], index: 4, kind: input, shape index: {}]
  %s5 = inlined_call_operand.vmem [shape: f32[16,1], index: 5, kind: input, shape index: {}]
  %s6 = inlined_call_operand.vmem [shape: f32[8,8], index: 6, kind: input, shape index: {}]
  %s7 = inlined_call_operand.vmem [shape: f32[8,1], index: 7, kind: input, shape index: {}]
  %s8 = inlined_call_operand.vmem [shape: f32[2,8,256], index: 8, kind: output, shape index: {}]
  %s9 = sld [smem:[#allocation0]]
  $region65: #{attention_block.1} parent=0
    _
  %s11 = ssub.s32 1, %s9
  %s12 = scalar_select 0, %s11, %s9
  loop: start=0, step=1, limit=6
  $region2: #{attention_block.1} parent=0 // loop_pre_header
    _
  $region3: #{attention_block.1} parent=0 // loop_header
    %s14 = sphi 0, %s18
    %p15 = scmp.ge.s32.totalorder %s14, 6
    %s21 = sphi 0, %s33
    %s22 = sphi 0, %s29
    %s23 = sphi 0, %s21
    %s24 = sphi 0, %s22
    %s25 = sphi 0, %s23
    %s26 = sphi 0, %s24
    %s38 = sphi 0, %s40
    %s41 = sphi 0, %s38
    %s42 = sphi 0, %s41
    %s58 = sphi 0, %s42
    %s64 = sphi 0, %s66
    %s67 = sphi 0, %s64
    %s68 = sphi 0, %s67
    %s84 = sphi 0, %s68
    %s88 = sphi 0, %s88
    %s90 = sphi 0, %s88
    %s91 = sphi 0, %s90
    %s105 = sphi 0, %s91
    %s109 = sphi 0, %s109
    %s111 = sphi 0, %s109
    %s112 = sphi 0, %s111
    %s126 = sphi 0, %s112
    %s130 = sphi 0, %s130
    %s132 = sphi 0, %s130
    %s133 = sphi 0, %s132
    %s147 = sphi 0, %s133
    %s151 = sphi 0, %s151
    %s153 = sphi 0, %s151
    %s154 = sphi 0, %s153
    %s168 = sphi 0, %s154
    %s172 = sphi 0, %s172
    %s174 = sphi 0, %s172
    %s175 = sphi 0, %s174
    %s189 = sphi 0, %s175
    %s193 = sphi 0, %s193
    %s195 = sphi 0, %s193
    %s196 = sphi 0, %s195
    %s210 = sphi 0, %s196
    %s218 = sphi 0, %s220
    %s221 = sphi 0, %s218
    %s222 = sphi 0, %s221
    %s238 = sphi 0, %s222
  $region4: #{attention_block.1} parent=0 // loop_header_branch
    %17 = sbr.rel (%p15) target = $region8
  $region5: #{attention_block.1} parent=0 // loop_body
    %s19 = ssub.s32 %s14, 1
    %s20 = ssub.s32 %s14, 2
    %s27 = sadd.s32 1, %s22
    %p28 = scmp.ge.s32.totalorder %s27, 2
    %s29 = scalar_select %p28, 0, %s27
    %s30 = sadd.s32 1, %s21
    %s31 = scalar_select %p28, %s30, %s21
    %p32 = scmp.ge.s32.totalorder %s31, 2
    %s33 = scalar_select %p32, 0, %s31
    %s34 = ssub.s32 %s21, %s33
    %s35 = ssub.s32 %s22, %s29
    %s36 = sor.u32 %s34, %s35
    %p37 = scmp.eq.s32.totalorder %s36, 0
    %s39 = sadd.s32 %s38, 1
    %s40 = scalar_select %p37, %s38, %s39
    %p43 = pneg %p37
    %p44 = scmp.eq.s32.totalorder %s14, 3
    %p45 = por %p43, %p44
    %p46 = scmp.ne.s32.totalorder %s38, %s41
    %p47 = scmp.eq.s32.totalorder %s14, 0
    %p48 = por %p46, %p47
    %p49 = scmp.ne.s32.totalorder %s38, %s41
    %p50 = scmp.eq.s32.totalorder %s19, 3
    %p51 = por %p49, %p50
    %p52 = scmp.ne.s32.totalorder %s41, %s42
    %p53 = scmp.eq.s32.totalorder %s19, 0
    %p54 = por %p52, %p53
    %p55 = scmp.ne.s32.totalorder %s41, %s42
    %p56 = scmp.eq.s32.totalorder %s20, 3
    %p57 = por %p55, %p56
    %p59 = scmp.ne.s32.totalorder %s42, %s58
    %p60 = scmp.eq.s32.totalorder %s20, 0
    %p61 = por %p59, %p60
    %s62 = ssub.s32 %s21, %s33
    %p63 = scmp.eq.s32.totalorder %s62, 0
    %s65 = sadd.s32 %s64, 1
    %s66 = scalar_select %p63, %s64, %s65
    %p69 = pneg %p63
    %p70 = scmp.eq.s32.totalorder %s14, 3
    %p71 = por %p69, %p70
    %p72 = scmp.ne.s32.totalorder %s64, %s67
    %p73 = scmp.eq.s32.totalorder %s14, 0
    %p74 = por %p72, %p73
    %p75 = scmp.ne.s32.totalorder %s64, %s67
    %p76 = scmp.eq.s32.totalorder %s19, 3
    %p77 = por %p75, %p76
    %p78 = scmp.ne.s32.totalorder %s67, %s68
    %p79 = scmp.eq.s32.totalorder %s19, 0
    %p80 = por %p78, %p79
    %p81 = scmp.ne.s32.totalorder %s67, %s68
    %p82 = scmp.eq.s32.totalorder %s20, 3
    %p83 = por %p81, %p82
    %p85 = scmp.ne.s32.totalorder %s68, %s84
    %p86 = scmp.eq.s32.totalorder %s20, 0
    %p87 = por %p85, %p86
    %s89 = sadd.s32 %s88, 1
    %p92 = scmp.eq.s32.totalorder %s14, 3
    %p93 = scmp.ne.s32.totalorder %s88, %s90
    %p94 = scmp.eq.s32.totalorder %s14, 0
    %p95 = por %p93, %p94
    %p96 = scmp.ne.s32.totalorder %s88, %s90
    %p97 = scmp.eq.s32.totalorder %s19, 3
    %p98 = por %p96, %p97
    %p99 = scmp.ne.s32.totalorder %s90, %s91
    %p100 = scmp.eq.s32.totalorder %s19, 0
    %p101 = por %p99, %p100
    %p102 = scmp.ne.s32.totalorder %s90, %s91
    %p103 = scmp.eq.s32.totalorder %s20, 3
    %p104 = por %p102, %p103
    %p106 = scmp.ne.s32.totalorder %s91, %s105
    %p107 = scmp.eq.s32.totalorder %s20, 0
    %p108 = por %p106, %p107
    %s110 = sadd.s32 %s109, 1
    %p113 = scmp.eq.s32.totalorder %s14, 3
    %p114 = scmp.ne.s32.totalorder %s109, %s111
    %p115 = scmp.eq.s32.totalorder %s14, 0
    %p116 = por %p114, %p115
    %p117 = scmp.ne.s32.totalorder %s109, %s111
    %p118 = scmp.eq.s32.totalorder %s19, 3
    %p119 = por %p117, %p118
    %p120 = scmp.ne.s32.totalorder %s111, %s112
    %p121 = scmp.eq.s32.totalorder %s19, 0
    %p122 = por %p120, %p121
    %p123 = scmp.ne.s32.totalorder %s111, %s112
    %p124 = scmp.eq.s32.totalorder %s20, 3
    %p125 = por %p123, %p124
    %p127 = scmp.ne.s32.totalorder %s112, %s126
    %p128 = scmp.eq.s32.totalorder %s20, 0
    %p129 = por %p127, %p128
    %s131 = sadd.s32 %s130, 1
    %p134 = scmp.eq.s32.totalorder %s14, 3
    %p135 = scmp.ne.s32.totalorder %s130, %s132
    %p136 = scmp.eq.s32.totalorder %s14, 0
    %p137 = por %p135, %p136
    %p138 = scmp.ne.s32.totalorder %s130, %s132
    %p139 = scmp.eq.s32.totalorder %s19, 3
    %p140 = por %p138, %p139
    %p141 = scmp.ne.s32.totalorder %s132, %s133
    %p142 = scmp.eq.s32.totalorder %s19, 0
    %p143 = por %p141, %p142
    %p144 = scmp.ne.s32.totalorder %s132, %s133
    %p145 = scmp.eq.s32.totalorder %s20, 3
    %p146 = por %p144, %p145
    %p148 = scmp.ne.s32.totalorder %s133, %s147
    %p149 = scmp.eq.s32.totalorder %s20, 0
    %p150 = por %p148, %p149
    %s152 = sadd.s32 %s151, 1
    %p155 = scmp.eq.s32.totalorder %s14, 3
    %p156 = scmp.ne.s32.totalorder %s151, %s153
    %p157 = scmp.eq.s32.totalorder %s14, 0
    %p158 = por %p156, %p157
    %p159 = scmp.ne.s32.totalorder %s151, %s153
    %p160 = scmp.eq.s32.totalorder %s19, 3
    %p161 = por %p159, %p160
    %p162 = scmp.ne.s32.totalorder %s153, %s154
    %p163 = scmp.eq.s32.totalorder %s19, 0
    %p164 = por %p162, %p163
    %p165 = scmp.ne.s32.totalorder %s153, %s154
    %p166 = scmp.eq.s32.totalorder %s20, 3
    %p167 = por %p165, %p166
    %p169 = scmp.ne.s32.totalorder %s154, %s168
    %p170 = scmp.eq.s32.totalorder %s20, 0
    %p171 = por %p169, %p170
    %s173 = sadd.s32 %s172, 1
    %p176 = scmp.eq.s32.totalorder %s14, 3
    %p177 = scmp.ne.s32.totalorder %s172, %s174
    %p178 = scmp.eq.s32.totalorder %s14, 0
    %p179 = por %p177, %p178
    %p180 = scmp.ne.s32.totalorder %s172, %s174
    %p181 = scmp.eq.s32.totalorder %s19, 3
    %p182 = por %p180, %p181
    %p183 = scmp.ne.s32.totalorder %s174, %s175
    %p184 = scmp.eq.s32.totalorder %s19, 0
    %p185 = por %p183, %p184
    %p186 = scmp.ne.s32.totalorder %s174, %s175
    %p187 = scmp.eq.s32.totalorder %s20, 3
    %p188 = por %p186, %p187
    %p190 = scmp.ne.s32.totalorder %s175, %s189
    %p191 = scmp.eq.s32.totalorder %s20, 0
    %p192 = por %p190, %p191
    %s194 = sadd.s32 %s193, 1
    %p197 = scmp.eq.s32.totalorder %s14, 3
    %p198 = scmp.ne.s32.totalorder %s193, %s195
    %p199 = scmp.eq.s32.totalorder %s14, 0
    %p200 = por %p198, %p199
    %p201 = scmp.ne.s32.totalorder %s193, %s195
    %p202 = scmp.eq.s32.totalorder %s19, 3
    %p203 = por %p201, %p202
    %p204 = scmp.ne.s32.totalorder %s195, %s196
    %p205 = scmp.eq.s32.totalorder %s19, 0
    %p206 = por %p204, %p205
    %p207 = scmp.ne.s32.totalorder %s195, %s196
    %p208 = scmp.eq.s32.totalorder %s20, 3
    %p209 = por %p207, %p208
    %p211 = scmp.ne.s32.totalorder %s196, %s210
    %p212 = scmp.eq.s32.totalorder %s20, 0
    %p213 = por %p211, %p212
    %s214 = ssub.s32 %s21, %s33
    %s215 = ssub.s32 %s22, %s29
    %s216 = sor.u32 %s214, %s215
    %p217 = scmp.eq.s32.totalorder %s216, 0
    %s219 = sadd.s32 %s218, 1
    %s220 = scalar_select %p217, %s218, %s219
    %p223 = pneg %p217
    %p224 = scmp.eq.s32.totalorder %s14, 3
    %p225 = por %p223, %p224
    %p226 = scmp.ne.s32.totalorder %s218, %s221
    %p227 = scmp.eq.s32.totalorder %s14, 0
    %p228 = por %p226, %p227
    %p229 = scmp.ne.s32.totalorder %s218, %s221
    %p230 = scmp.eq.s32.totalorder %s19, 3
    %p231 = por %p229, %p230
    %p232 = scmp.ne.s32.totalorder %s221, %s222
    %p233 = scmp.eq.s32.totalorder %s19, 0
    %p234 = por %p232, %p233
    %p235 = scmp.ne.s32.totalorder %s221, %s222
    %p236 = scmp.eq.s32.totalorder %s20, 3
    %p237 = por %p235, %p236
    %p239 = scmp.ne.s32.totalorder %s222, %s238
    %p240 = scmp.eq.s32.totalorder %s20, 0
    %p241 = por %p239, %p240
    %p242 = scmp.le.s32.totalorder 1, %s14
    %p243 = scmp.lt.s32.totalorder %s14, 5
    %p244 = pnand %p242, %p243
    %p245 = pneg %p244
    // Predicated region
    $region9: #{attention_block.1} parent=5 // pred_check
      _
    $region10: #{attention_block.1} parent=5 // pred_check_branch
      %247 = sbr.rel (%p244) target = $region12
    $region11: #{attention_block.1} parent=5 // pred_region
      %s248 = ssub.s32 %s14, 1
      // Predicated region
      $region13: #{attention_block.1} parent=11 // pred_check
        %p249 = pneg %p101
      $region14: #{attention_block.1} parent=11 // pred_check_branch
        %251 = sbr.rel (%p249) target = $region16
      $region15: #{attention_block.1} parent=11 // pred_region
        _
      $region16: #{attention_block.1} parent=11 // pred_fallthru
        _
      // Predicated region
      $region17: #{attention_block.1} parent=11 // pred_check
        %p252 = pneg %p122
      $region18: #{attention_block.1} parent=11 // pred_check_branch
        %254 = sbr.rel (%p252) target = $region20
      $region19: #{attention_block.1} parent=11 // pred_region
        _
      $region20: #{attention_block.1} parent=11 // pred_fallthru
        _
      // Predicated region
      $region21: #{attention_block.1} parent=11 // pred_check
        %p255 = pneg %p143
      $region22: #{attention_block.1} parent=11 // pred_check_branch
        %257 = sbr.rel (%p255) target = $region24
      $region23: #{attention_block.1} parent=11 // pred_region
        _
      $region24: #{attention_block.1} parent=11 // pred_fallthru
        _
      // Predicated region
      $region25: #{attention_block.1} parent=11 // pred_check
        %p258 = pneg %p164
      $region26: #{attention_block.1} parent=11 // pred_check_branch
        %260 = sbr.rel (%p258) target = $region28
      $region27: #{attention_block.1} parent=11 // pred_region
        _
      $region28: #{attention_block.1} parent=11 // pred_fallthru
        _
      // Predicated region
      $region29: #{attention_block.1} parent=11 // pred_check
        %p261 = pneg %p185
      $region30: #{attention_block.1} parent=11 // pred_check_branch
        %263 = sbr.rel (%p261) target = $region32
      $region31: #{attention_block.1} parent=11 // pred_region
        _
      $region32: #{attention_block.1} parent=11 // pred_fallthru
        _
      // Predicated region
      $region33: #{attention_block.1} parent=11 // pred_check
        %p264 = pneg %p206
      $region34: #{attention_block.1} parent=11 // pred_check_branch
        %266 = sbr.rel (%p264) target = $region36
      $region35: #{attention_block.1} parent=11 // pred_region
        _
      $region36: #{attention_block.1} parent=11 // pred_fallthru
        _
    $region12: #{attention_block.1} parent=5 // pred_fallthru
      _
    %p267 = scmp.lt.s32.totalorder %s14, 4
    // Predicated region
    $region37: #{attention_block.1} parent=5 // pred_check
      %p268 = pneg %p267
    $region38: #{attention_block.1} parent=5 // pred_check_branch
      %270 = sbr.rel (%p268) target = $region40
    $region39: #{attention_block.1} parent=5 // pred_region
      // Predicated region
      $region41: #{attention_block.1} parent=39 // pred_check
        %p271 = pneg %p48
      $region42: #{attention_block.1} parent=39 // pred_check_branch
        %273 = sbr.rel (%p271) target = $region44
      $region43: #{attention_block.1} parent=39 // pred_region
        %p274 = scmp.lt.s32.totalorder %s21, 1
        %s275 = scalar_select %p274, %s21, 1
        %p276 = scmp.lt.s32.totalorder %s22, 1
        %s277 = scalar_select %p276, %s22, 1
        %s278 = smul.addr %s275, 2
        %s279 = sadd.s32 %s277, %s278
        %s280 = smul.addr %s279, 8
        %s281 = scalar_lea.vmem %s0, %s280
      $region44: #{attention_block.1} parent=39 // pred_fallthru
        _
      // Predicated region
      $region45: #{attention_block.1} parent=39 // pred_check
        %p282 = pneg %p74
      $region46: #{attention_block.1} parent=39 // pred_check_branch
        %284 = sbr.rel (%p282) target = $region48
      $region47: #{attention_block.1} parent=39 // pred_region
        %p285 = scmp.lt.s32.totalorder %s21, 1
        %s286 = scalar_select %p285, %s21, 1
        %s287 = smul.addr %s286, 2
        %s288 = smul.addr %s287, 8
        %s289 = scalar_lea.vmem %s1, %s288
      $region48: #{attention_block.1} parent=39 // pred_fallthru
        _
    $region40: #{attention_block.1} parent=5 // pred_fallthru
      _
    %p290 = scmp.le.s32.totalorder 1, %s14
    %p291 = scmp.lt.s32.totalorder %s14, 5
    %p292 = pnand %p290, %p291
    %p293 = pneg %p292
    // Predicated region
    $region49: #{attention_block.1} parent=5 // pred_check
      _
    $region50: #{attention_block.1} parent=5 // pred_check_branch
      %295 = sbr.rel (%p292) target = $region52
    $region51: #{attention_block.1} parent=5 // pred_region
      %s296 = ssub.s32 %s14, 1
      %p297 = scmp.lt.s32.totalorder %s23, 1
      %s298 = scalar_select %p297, %s23, 1
      %p299 = scmp.lt.s32.totalorder %s24, 1
      %s300 = scalar_select %p299, %s24, 1
      %s301 = smul.addr %s298, 2
      %s302 = sadd.s32 %s300, %s301
      %s303 = smul.addr %s302, 8
      %s304 = scalar_lea.vmem %s0, %s303
      %p305 = pneg %p54
      %p306 = pneg %p51
      %p307 = scmp.lt.s32.totalorder %s23, 1
      %s308 = scalar_select %p307, %s23, 1
      %s309 = smul.addr %s308, 2
      %s310 = smul.addr %s309, 8
      %s311 = scalar_lea.vmem %s1, %s310
      %p312 = pneg %p80
      %p313 = pneg %p77
      %p314 = pneg %p101
      %p315 = pneg %p98
      %p316 = pneg %p122
      %p317 = pneg %p119
      %p318 = pneg %p143
      %p319 = pneg %p140
      %p320 = pneg %p164
      %p321 = pneg %p161
      %p322 = pneg %p185
      %p323 = pneg %p182
      %p324 = pneg %p206
      %p325 = pneg %p203
      %p326 = pneg %p234
      %p327 = pneg %p231
      %p328 = scmp.lt.s32.totalorder %s23, 1
      %s329 = scalar_select %p328, %s23, 1
      %p330 = scmp.lt.s32.totalorder %s24, 1
      %s331 = scalar_select %p330, %s24, 1
      %s332 = smul.addr %s329, 2
      %s333 = sadd.s32 %s331, %s332
      %s334 = smul.addr %s333, 8
      %s335 = scalar_lea.vmem %s8, %s334
      %p336 = scmp.lt.s32.totalorder %s23, 1
      %s337 = scalar_select %p336, %s23, 1
      %p338 = scmp.lt.s32.totalorder %s24, 1
      %s339 = scalar_select %p338, %s24, 1
      %s340 = smul.addr %s337, 2
      %s341 = sadd.s32 %s339, %s340
      %s342 = smul.addr %s341, 8
      %s343 = scalar_lea.vmem %s0, %s342
      %p344 = scmp.lt.s32.totalorder %s23, 1
      %s345 = scalar_select %p344, %s23, 1
      %s346 = smul.addr %s345, 2
      %s347 = smul.addr %s346, 8
      %s348 = scalar_lea.vmem %s1, %s347
      %p349 = scmp.lt.s32.totalorder %s23, 1
      %s350 = scalar_select %p349, %s23, 1
      %p351 = scmp.lt.s32.totalorder %s24, 1
      %s352 = scalar_select %p351, %s24, 1
      %s353 = smul.addr %s350, 2
      %s354 = sadd.s32 %s352, %s353
      %s355 = smul.addr %s354, 8
      %s356 = scalar_lea.vmem %s8, %s355
      %v357 = vld [vmem:[%s343] sm:$0xff]
      %v358 = vld [vmem:[%s348] sm:$0xff]
      %v359 = vld [vmem:[%s348 + $0x8] sm:$0xff]
      %v360 = vld [vmem:[%s2] sm:$0xff]
      %v361 = vld [vmem:[%s3] sm:$0xff]
      %363 = vset.pattern.permute.xlu0 0
      %364 = vperm.xlu0 %363, %v361
      %v365 = vpop.permute.xlu0 %364
      %vm367 = vcmask 64512
      %v369 = vsel %vm367, %v360, 0
      %371 = vmatpush.msra.mxu0 0.0
      %372 = vmatpush.msra.mxu0 0.0
      %373 = vmatpush.msra.mxu0 0.0
      %374 = vmatpush.msra.mxu0 0.0
      %375 = vmatpush.msra.mxu0 0.0
      %376 = vmatpush.msra.mxu0 0.0
      %377 = vmatpush.msra.mxu0 0.0
      %378 = vmatpush.msra.mxu0 0.0
      %379 = vmatpush.msra.mxu0 0.0
      %380 = vmatpush.msra.mxu0 0.0
      %381 = vmatpush.msra.mxu0 0.0
      %382 = vmatpush.msra.mxu0 0.0
      %383 = vmatpush.msra.mxu0 0.0
      %384 = vmatpush.msra.mxu0 0.0
      %385 = vmatpush.msra.mxu0 0.0
      %386 = vmatpush.msra.mxu0 %v357
      %387 = vmatmul.f32.gmra.mxu0 %v369
      %v388 = vpop.f32.mrf.mxu0
      %v389 = vadd.f32 %v365, %v388
      %390 = vdwg.mxu0
      %v391 = vld [vmem:[%s4] sm:$0xff]
      %v392 = vld [vmem:[%s4 + $0x8] sm:$0xff]
      %v393 = vld [vmem:[%s5] sm:$0xff]
      %v394 = vld [vmem:[%s5 + $0x8] sm:$0xff]
      %396 = vset.pattern.permute.xlu0 0
      %397 = vperm.xlu0 %396, %v393
      %v398 = vpop.permute.xlu0 %397
      %401 = vset.pattern.permute.xlu0 0
      %402 = vperm.xlu0 %401, %v394
      %v403 = vpop.permute.xlu0 %402
      %v406 = vsel %vm367, %v391, 0
      %v409 = vsel %vm367, %v392, 0
      %411 = vmatpush.msra.mxu0 0.0
      %412 = vmatpush.msra.mxu0 0.0
      %413 = vmatpush.msra.mxu0 0.0
      %414 = vmatpush.msra.mxu0 0.0
      %415 = vmatpush.msra.mxu0 0.0
      %416 = vmatpush.msra.mxu0 0.0
      %417 = vmatpush.msra.mxu0 0.0
      %418 = vmatpush.msra.mxu0 0.0
      %419 = vmatpush.msra.mxu0 0.0
      %420 = vmatpush.msra.mxu0 0.0
      %421 = vmatpush.msra.mxu0 0.0
      %422 = vmatpush.msra.mxu0 0.0
      %423 = vmatpush.msra.mxu0 0.0
      %424 = vmatpush.msra.mxu0 0.0
      %425 = vmatpush.msra.mxu0 0.0
      %426 = vmatpush.msra.mxu0 %v358
      %427 = vmatmul.f32.gmra.mxu0 %v406
      %v428 = vpop.f32.mrf.mxu0
      %v429 = vadd.f32 %v398, %v428
      %430 = vmatmul.f32.gmra.mxu0 %v409
      %v431 = vpop.f32.mrf.mxu0
      %v432 = vadd.f32 %v403, %v431
      %433 = vdwg.mxu0
      %434 = vmatpush.msra.mxu0 0.0
      %435 = vmatpush.msra.mxu0 0.0
      %436 = vmatpush.msra.mxu0 0.0
      %437 = vmatpush.msra.mxu0 0.0
      %438 = vmatpush.msra.mxu0 0.0
      %439 = vmatpush.msra.mxu0 0.0
      %440 = vmatpush.msra.mxu0 0.0
      %441 = vmatpush.msra.mxu0 0.0
      %442 = vmatpush.msra.mxu0 0.0
      %443 = vmatpush.msra.mxu0 0.0
      %444 = vmatpush.msra.mxu0 0.0
      %445 = vmatpush.msra.mxu0 0.0
      %446 = vmatpush.msra.mxu0 0.0
      %447 = vmatpush.msra.mxu0 0.0
      %448 = vmatpush.msra.mxu0 0.0
      %449 = vmatpush.msra.mxu0 %v359
      %450 = vmatmul.f32.gmra.mxu0 %v406
      %v451 = vpop.f32.mrf.mxu0
      %v452 = vadd.f32 %v398, %v451
      %453 = vmatmul.f32.gmra.mxu0 %v409
      %v454 = vpop.f32.mrf.mxu0
      %v455 = vadd.f32 %v403, %v454
      %456 = vdwg.mxu0
      %457 = vxpose.xlu0.b32.start [1/16] %v389, 128
      %458 = vxpose.xlu0.b32.cont [2/16] 0.0, 128
      %459 = vxpose.xlu0.b32.cont [3/16] 0.0, 128
      %460 = vxpose.xlu0.b32.cont [4/16] 0.0, 128
      %461 = vxpose.xlu0.b32.cont [5/16] 0.0, 128
      %462 = vxpose.xlu0.b32.cont [6/16] 0.0, 128
      %463 = vxpose.xlu0.b32.cont [7/16] 0.0, 128
      %464 = vxpose.xlu0.b32.cont [8/16] 0.0, 128
      %465 = vxpose.xlu0.b32.cont [9/16] 0.0, 128
      %466 = vxpose.xlu0.b32.cont [10/16] 0.0, 128
      %467 = vxpose.xlu0.b32.cont [11/16] 0.0, 128
      %468 = vxpose.xlu0.b32.cont [12/16] 0.0, 128
      %469 = vxpose.xlu0.b32.cont [13/16] 0.0, 128
      %470 = vxpose.xlu0.b32.cont [14/16] 0.0, 128
      %471 = vxpose.xlu0.b32.cont [15/16] 0.0, 128
      %472 = vxpose.xlu0.b32.end [16/16] 0.0, 128
      %v473 = vpop.trf.xlu0
      %v474 = vpop.trf.xlu0
      %v475 = vpop.trf.xlu0
      %v476 = vpop.trf.xlu0
      %v477 = vpop.trf.xlu0
      %v478 = vpop.trf.xlu0
      %v479 = vpop.trf.xlu0
      %v480 = vpop.trf.xlu0
      %v481 = vpop.trf.xlu0
      %v482 = vpop.trf.xlu0
      %v483 = vpop.trf.xlu0
      %v484 = vpop.trf.xlu0
      %v485 = vpop.trf.xlu0
      %v486 = vpop.trf.xlu0
      %v487 = vpop.trf.xlu0
      %v488 = vpop.trf.xlu0
      %v489 = vld [vmem:[%s6] sm:$0xff]
      %v490 = vld [vmem:[%s7] sm:$0xff]
      %492 = vset.pattern.permute.xlu0 0
      %493 = vperm.xlu0 %492, %v490
      %v494 = vpop.permute.xlu0 %493
      %v496 = vadd.f32 %v494, %v357
      %vm497 = vcmask 31744
      %v499 = vsel %vm497, %v473, 0
      %v502 = vsel %vm497, %v474, 0
      %v505 = vsel %vm497, %v475, 0
      %v508 = vsel %vm497, %v476, 0
      %v511 = vsel %vm497, %v477, 0
      %v514 = vsel %vm497, %v478, 0
      %v517 = vsel %vm497, %v479, 0
      %v520 = vsel %vm497, %v480, 0
      %v523 = vsel %vm497, %v481, 0
      %v526 = vsel %vm497, %v482, 0
      %v529 = vsel %vm497, %v483, 0
      %v532 = vsel %vm497, %v484, 0
      %v535 = vsel %vm497, %v485, 0
      %v538 = vsel %vm497, %v486, 0
      %v541 = vsel %vm497, %v487, 0
      %v544 = vsel %vm497, %v488, 0
      %vm546 = vcmask 1043456
      %v548 = vsel %vm546, %v429, 0
      %v551 = vsel %vm546, %v452, 0
      %553 = vmatpush.msra.mxu0 0.0
      %554 = vmatpush.msra.mxu0 0.0
      %555 = vmatpush.msra.mxu0 0.0
      %556 = vmatpush.msra.mxu0 0.0
      %557 = vmatpush.msra.mxu0 0.0
      %558 = vmatpush.msra.mxu0 0.0
      %559 = vmatpush.msra.mxu0 0.0
      %560 = vmatpush.msra.mxu0 0.0
      %561 = vmatpush.msra.mxu0 0.0
      %562 = vmatpush.msra.mxu0 0.0
      %563 = vmatpush.msra.mxu0 0.0
      %564 = vmatpush.msra.mxu0 0.0
      %565 = vmatpush.msra.mxu0 0.0
      %566 = vmatpush.msra.mxu0 0.0
      %567 = vmatpush.msra.mxu0 0.0
      %568 = vmatpush.msra.mxu0 %v548
      %569 = vmatmul.f32.gmra.mxu0 %v499
      %v570 = vpop.f32.mrf.mxu0
      %v571 = vadd.f32 0.0, %v570
      %572 = vmatmul.f32.gmra.mxu0 %v502
      %v573 = vpop.f32.mrf.mxu0
      %v574 = vadd.f32 0.0, %v573
      %575 = vmatmul.f32.gmra.mxu0 %v505
      %v576 = vpop.f32.mrf.mxu0
      %v577 = vadd.f32 0.0, %v576
      %578 = vmatmul.f32.gmra.mxu0 %v508
      %v579 = vpop.f32.mrf.mxu0
      %v580 = vadd.f32 0.0, %v579
      %581 = vmatmul.f32.gmra.mxu0 %v511
      %v582 = vpop.f32.mrf.mxu0
      %v583 = vadd.f32 0.0, %v582
      %584 = vmatmul.f32.gmra.mxu0 %v514
      %v585 = vpop.f32.mrf.mxu0
      %v586 = vadd.f32 0.0, %v585
      %587 = vmatmul.f32.gmra.mxu0 %v517
      %v588 = vpop.f32.mrf.mxu0
      %v589 = vadd.f32 0.0, %v588
      %590 = vmatmul.f32.gmra.mxu0 %v520
      %v591 = vpop.f32.mrf.mxu0
      %v592 = vadd.f32 0.0, %v591
      %593 = vmatmul.f32.gmra.mxu0 %v523
      %v594 = vpop.f32.mrf.mxu0
      %v595 = vadd.f32 0.0, %v594
      %596 = vmatmul.f32.gmra.mxu0 %v526
      %v597 = vpop.f32.mrf.mxu0
      %v598 = vadd.f32 0.0, %v597
      %599 = vmatmul.f32.gmra.mxu0 %v529
      %v600 = vpop.f32.mrf.mxu0
      %v601 = vadd.f32 0.0, %v600
      %602 = vmatmul.f32.gmra.mxu0 %v532
      %v603 = vpop.f32.mrf.mxu0
      %v604 = vadd.f32 0.0, %v603
      %605 = vmatmul.f32.gmra.mxu0 %v535
      %v606 = vpop.f32.mrf.mxu0
      %v607 = vadd.f32 0.0, %v606
      %608 = vmatmul.f32.gmra.mxu0 %v538
      %v609 = vpop.f32.mrf.mxu0
      %v610 = vadd.f32 0.0, %v609
      %611 = vmatmul.f32.gmra.mxu0 %v541
      %v612 = vpop.f32.mrf.mxu0
      %v613 = vadd.f32 0.0, %v612
      %614 = vmatmul.f32.gmra.mxu0 %v544
      %v615 = vpop.f32.mrf.mxu0
      %v616 = vadd.f32 0.0, %v615
      %617 = vdwg.mxu0
      %618 = vmatpush.msra.mxu0 0.0
      %619 = vmatpush.msra.mxu0 0.0
      %620 = vmatpush.msra.mxu0 0.0
      %621 = vmatpush.msra.mxu0 0.0
      %622 = vmatpush.msra.mxu0 0.0
      %623 = vmatpush.msra.mxu0 0.0
      %624 = vmatpush.msra.mxu0 0.0
      %625 = vmatpush.msra.mxu0 0.0
      %626 = vmatpush.msra.mxu0 0.0
      %627 = vmatpush.msra.mxu0 0.0
      %628 = vmatpush.msra.mxu0 0.0
      %629 = vmatpush.msra.mxu0 0.0
      %630 = vmatpush.msra.mxu0 0.0
      %631 = vmatpush.msra.mxu0 0.0
      %632 = vmatpush.msra.mxu0 0.0
      %633 = vmatpush.msra.mxu0 %v551
      %634 = vmatmul.f32.gmra.mxu0 %v499
      %v635 = vpop.f32.mrf.mxu0
      %v636 = vadd.f32 0.0, %v635
      %637 = vmatmul.f32.gmra.mxu0 %v502
      %v638 = vpop.f32.mrf.mxu0
      %v639 = vadd.f32 0.0, %v638
      %640 = vmatmul.f32.gmra.mxu0 %v505
      %v641 = vpop.f32.mrf.mxu0
      %v642 = vadd.f32 0.0, %v641
      %643 = vmatmul.f32.gmra.mxu0 %v508
      %v644 = vpop.f32.mrf.mxu0
      %v645 = vadd.f32 0.0, %v644
      %646 = vmatmul.f32.gmra.mxu0 %v511
      %v647 = vpop.f32.mrf.mxu0
      %v648 = vadd.f32 0.0, %v647
      %649 = vmatmul.f32.gmra.mxu0 %v514
      %v650 = vpop.f32.mrf.mxu0
      %v651 = vadd.f32 0.0, %v650
      %652 = vmatmul.f32.gmra.mxu0 %v517
      %v653 = vpop.f32.mrf.mxu0
      %v654 = vadd.f32 0.0, %v653
      %655 = vmatmul.f32.gmra.mxu0 %v520
      %v656 = vpop.f32.mrf.mxu0
      %v657 = vadd.f32 0.0, %v656
      %658 = vmatmul.f32.gmra.mxu0 %v523
      %v659 = vpop.f32.mrf.mxu0
      %v660 = vadd.f32 0.0, %v659
      %661 = vmatmul.f32.gmra.mxu0 %v526
      %v662 = vpop.f32.mrf.mxu0
      %v663 = vadd.f32 0.0, %v662
      %664 = vmatmul.f32.gmra.mxu0 %v529
      %v665 = vpop.f32.mrf.mxu0
      %v666 = vadd.f32 0.0, %v665
      %667 = vmatmul.f32.gmra.mxu0 %v532
      %v668 = vpop.f32.mrf.mxu0
      %v669 = vadd.f32 0.0, %v668
      %670 = vmatmul.f32.gmra.mxu0 %v535
      %v671 = vpop.f32.mrf.mxu0
      %v672 = vadd.f32 0.0, %v671
      %673 = vmatmul.f32.gmra.mxu0 %v538
      %v674 = vpop.f32.mrf.mxu0
      %v675 = vadd.f32 0.0, %v674
      %676 = vmatmul.f32.gmra.mxu0 %v541
      %v677 = vpop.f32.mrf.mxu0
      %v678 = vadd.f32 0.0, %v677
      %679 = vmatmul.f32.gmra.mxu0 %v544
      %v680 = vpop.f32.mrf.mxu0
      %v681 = vadd.f32 0.0, %v680
      %682 = vdwg.mxu0
      %v683 = vmax.f32 %v571, %v636
      %684 = vmax.xlane.f32.xlu0 %v683
      %v685 = vpop.xlane.xlu0 %684
      %v686 = vmax.f32 %v574, %v639
      %687 = vmax.xlane.f32.xlu0 %v686
      %v688 = vpop.xlane.xlu0 %687
      %v689 = vmax.f32 %v577, %v642
      %690 = vmax.xlane.f32.xlu0 %v689
      %v691 = vpop.xlane.xlu0 %690
      %v692 = vmax.f32 %v580, %v645
      %693 = vmax.xlane.f32.xlu0 %v692
      %v694 = vpop.xlane.xlu0 %693
      %v695 = vmax.f32 %v583, %v648
      %696 = vmax.xlane.f32.xlu0 %v695
      %v697 = vpop.xlane.xlu0 %696
      %v698 = vmax.f32 %v586, %v651
      %699 = vmax.xlane.f32.xlu0 %v698
      %v700 = vpop.xlane.xlu0 %699
      %v701 = vmax.f32 %v589, %v654
      %702 = vmax.xlane.f32.xlu0 %v701
      %v703 = vpop.xlane.xlu0 %702
      %v704 = vmax.f32 %v592, %v657
      %705 = vmax.xlane.f32.xlu0 %v704
      %v706 = vpop.xlane.xlu0 %705
      %v707 = vmax.f32 %v595, %v660
      %708 = vmax.xlane.f32.xlu0 %v707
      %v709 = vpop.xlane.xlu0 %708
      %v710 = vmax.f32 %v598, %v663
      %711 = vmax.xlane.f32.xlu0 %v710
      %v712 = vpop.xlane.xlu0 %711
      %v713 = vmax.f32 %v601, %v666
      %714 = vmax.xlane.f32.xlu0 %v713
      %v715 = vpop.xlane.xlu0 %714
      %v716 = vmax.f32 %v604, %v669
      %717 = vmax.xlane.f32.xlu0 %v716
      %v718 = vpop.xlane.xlu0 %717
      %v719 = vmax.f32 %v607, %v672
      %720 = vmax.xlane.f32.xlu0 %v719
      %v721 = vpop.xlane.xlu0 %720
      %v722 = vmax.f32 %v610, %v675
      %723 = vmax.xlane.f32.xlu0 %v722
      %v724 = vpop.xlane.xlu0 %723
      %v725 = vmax.f32 %v613, %v678
      %726 = vmax.xlane.f32.xlu0 %v725
      %v727 = vpop.xlane.xlu0 %726
      %v728 = vmax.f32 %v616, %v681
      %729 = vmax.xlane.f32.xlu0 %v728
      %v730 = vpop.xlane.xlu0 %729
      %v731 = vsub.f32 %v571, %v685
      %v732 = vsub.f32 %v636, %v685
      %v733 = vsub.f32 %v574, %v688
      %v734 = vsub.f32 %v639, %v688
      %v735 = vsub.f32 %v577, %v691
      %v736 = vsub.f32 %v642, %v691
      %v737 = vsub.f32 %v580, %v694
      %v738 = vsub.f32 %v645, %v694
      %v739 = vsub.f32 %v583, %v697
      %v740 = vsub.f32 %v648, %v697
      %v741 = vsub.f32 %v586, %v700
      %v742 = vsub.f32 %v651, %v700
      %v743 = vsub.f32 %v589, %v703
      %v744 = vsub.f32 %v654, %v703
      %v745 = vsub.f32 %v592, %v706
      %v746 = vsub.f32 %v657, %v706
      %v747 = vsub.f32 %v595, %v709
      %v748 = vsub.f32 %v660, %v709
      %v749 = vsub.f32 %v598, %v712
      %v750 = vsub.f32 %v663, %v712
      %v751 = vsub.f32 %v601, %v715
      %v752 = vsub.f32 %v666, %v715
      %v753 = vsub.f32 %v604, %v718
      %v754 = vsub.f32 %v669, %v718
      %v755 = vsub.f32 %v607, %v721
      %v756 = vsub.f32 %v672, %v721
      %v757 = vsub.f32 %v610, %v724
      %v758 = vsub.f32 %v675, %v724
      %v759 = vsub.f32 %v613, %v727
      %v760 = vsub.f32 %v678, %v727
      %v761 = vsub.f32 %v616, %v730
      %v762 = vsub.f32 %v681, %v730
      %v763 = vmul.f32 %v731, 1.442695
      %v764 = vpow.pop %v763
      %v765 = vmul.f32 %v732, 1.442695
      %v766 = vpow.pop %v765
      %v767 = vmul.f32 %v733, 1.442695
      %v768 = vpow.pop %v767
      %v769 = vmul.f32 %v734, 1.442695
      %v770 = vpow.pop %v769
      %v771 = vmul.f32 %v735, 1.442695
      %v772 = vpow.pop %v771
      %v773 = vmul.f32 %v736, 1.442695
      %v774 = vpow.pop %v773
      %v775 = vmul.f32 %v737, 1.442695
      %v776 = vpow.pop %v775
      %v777 = vmul.f32 %v738, 1.442695
      %v778 = vpow.pop %v777
      %v779 = vmul.f32 %v739, 1.442695
      %v780 = vpow.pop %v779
      %v781 = vmul.f32 %v740, 1.442695
      %v782 = vpow.pop %v781
      %v783 = vmul.f32 %v741, 1.442695
      %v784 = vpow.pop %v783
      %v785 = vmul.f32 %v742, 1.442695
      %v786 = vpow.pop %v785
      %v787 = vmul.f32 %v743, 1.442695
      %v788 = vpow.pop %v787
      %v789 = vmul.f32 %v744, 1.442695
      %v790 = vpow.pop %v789
      %v791 = vmul.f32 %v745, 1.442695
      %v792 = vpow.pop %v791
      %v793 = vmul.f32 %v746, 1.442695
      %v794 = vpow.pop %v793
      %v795 = vmul.f32 %v747, 1.442695
      %v796 = vpow.pop %v795
      %v797 = vmul.f32 %v748, 1.442695
      %v798 = vpow.pop %v797
      %v799 = vmul.f32 %v749, 1.442695
      %v800 = vpow.pop %v799
      %v801 = vmul.f32 %v750, 1.442695
      %v802 = vpow.pop %v801
      %v803 = vmul.f32 %v751, 1.442695
      %v804 = vpow.pop %v803
      %v805 = vmul.f32 %v752, 1.442695
      %v806 = vpow.pop %v805
      %v807 = vmul.f32 %v753, 1.442695
      %v808 = vpow.pop %v807
      %v809 = vmul.f32 %v754, 1.442695
      %v810 = vpow.pop %v809
      %v811 = vmul.f32 %v755, 1.442695
      %v812 = vpow.pop %v811
      %v813 = vmul.f32 %v756, 1.442695
      %v814 = vpow.pop %v813
      %v815 = vmul.f32 %v757, 1.442695
      %v816 = vpow.pop %v815
      %v817 = vmul.f32 %v758, 1.442695
      %v818 = vpow.pop %v817
      %v819 = vmul.f32 %v759, 1.442695
      %v820 = vpow.pop %v819
      %v821 = vmul.f32 %v760, 1.442695
      %v822 = vpow.pop %v821
      %v823 = vmul.f32 %v761, 1.442695
      %v824 = vpow.pop %v823
      %v825 = vmul.f32 %v762, 1.442695
      %v826 = vpow.pop %v825
      %v827 = vadd.f32 %v764, %v766
      %828 = vadd.xlane.f32.xlu0 %v827
      %v829 = vpop.xlane.xlu0 %828
      %v830 = vadd.f32 %v768, %v770
      %831 = vadd.xlane.f32.xlu0 %v830
      %v832 = vpop.xlane.xlu0 %831
      %v833 = vadd.f32 %v772, %v774
      %834 = vadd.xlane.f32.xlu0 %v833
      %v835 = vpop.xlane.xlu0 %834
      %v836 = vadd.f32 %v776, %v778
      %837 = vadd.xlane.f32.xlu0 %v836
      %v838 = vpop.xlane.xlu0 %837
      %v839 = vadd.f32 %v780, %v782
      %840 = vadd.xlane.f32.xlu0 %v839
      %v841 = vpop.xlane.xlu0 %840
      %v842 = vadd.f32 %v784, %v786
      %843 = vadd.xlane.f32.xlu0 %v842
      %v844 = vpop.xlane.xlu0 %843
      %v845 = vadd.f32 %v788, %v790
      %846 = vadd.xlane.f32.xlu0 %v845
      %v847 = vpop.xlane.xlu0 %846
      %v848 = vadd.f32 %v792, %v794
      %849 = vadd.xlane.f32.xlu0 %v848
      %v850 = vpop.xlane.xlu0 %849
      %v851 = vadd.f32 %v796, %v798
      %852 = vadd.xlane.f32.xlu0 %v851
      %v853 = vpop.xlane.xlu0 %852
      %v854 = vadd.f32 %v800, %v802
      %855 = vadd.xlane.f32.xlu0 %v854
      %v856 = vpop.xlane.xlu0 %855
      %v857 = vadd.f32 %v804, %v806
      %858 = vadd.xlane.f32.xlu0 %v857
      %v859 = vpop.xlane.xlu0 %858
      %v860 = vadd.f32 %v808, %v810
      %861 = vadd.xlane.f32.xlu0 %v860
      %v862 = vpop.xlane.xlu0 %861
      %v863 = vadd.f32 %v812, %v814
      %864 = vadd.xlane.f32.xlu0 %v863
      %v865 = vpop.xlane.xlu0 %864
      %v866 = vadd.f32 %v816, %v818
      %867 = vadd.xlane.f32.xlu0 %v866
      %v868 = vpop.xlane.xlu0 %867
      %v869 = vadd.f32 %v820, %v822
      %870 = vadd.xlane.f32.xlu0 %v869
      %v871 = vpop.xlane.xlu0 %870
      %v872 = vadd.f32 %v824, %v826
      %873 = vadd.xlane.f32.xlu0 %v872
      %v874 = vpop.xlane.xlu0 %873
      %v875 = vrcp.pop %v829
      %v876 = vmul.f32 %v829, %v875
      %v877 = vsub.f32 1.0, %v876
      %v878 = vmul.f32 %v875, %v877
      %v879 = vadd.f32 %v875, %v878
      %vm880 = vweird.f32 %v829
      %vm881 = vweird.f32 %v875
      %vm882 = vmor %vm880, %vm881
      %v883 = vsel %vm882, %v875, %v879
      %v884 = vand.u32 2147483647, %v829
      %vm885 = vcmp.eq.f32.partialorder %v884, 8.507059e+37
      %v886 = vand.u32 %v829, 2147483648
      %v887 = vor.u32 1.1754944e-38, %v886
      %v888 = vsel %vm885, %v887, %v883
      %v889 = vmul.f32 %v764, %v888
      %v890 = vmul.f32 %v766, %v888
      %v891 = vrcp.pop %v832
      %v892 = vmul.f32 %v832, %v891
      %v893 = vsub.f32 1.0, %v892
      %v894 = vmul.f32 %v891, %v893
      %v895 = vadd.f32 %v891, %v894
      %vm896 = vweird.f32 %v832
      %vm897 = vweird.f32 %v891
      %vm898 = vmor %vm896, %vm897
      %v899 = vsel %vm898, %v891, %v895
      %v900 = vand.u32 2147483647, %v832
      %vm901 = vcmp.eq.f32.partialorder %v900, 8.507059e+37
      %v902 = vand.u32 %v832, 2147483648
      %v903 = vor.u32 1.1754944e-38, %v902
      %v904 = vsel %vm901, %v903, %v899
      %v905 = vmul.f32 %v768, %v904
      %v906 = vmul.f32 %v770, %v904
      %v907 = vrcp.pop %v835
      %v908 = vmul.f32 %v835, %v907
      %v909 = vsub.f32 1.0, %v908
      %v910 = vmul.f32 %v907, %v909
      %v911 = vadd.f32 %v907, %v910
      %vm912 = vweird.f32 %v835
      %vm913 = vweird.f32 %v907
      %vm914 = vmor %vm912, %vm913
      %v915 = vsel %vm914, %v907, %v911
      %v916 = vand.u32 2147483647, %v835
      %vm917 = vcmp.eq.f32.partialorder %v916, 8.507059e+37
      %v918 = vand.u32 %v835, 2147483648
      %v919 = vor.u32 1.1754944e-38, %v918
      %v920 = vsel %vm917, %v919, %v915
      %v921 = vmul.f32 %v772, %v920
      %v922 = vmul.f32 %v774, %v920
      %v923 = vrcp.pop %v838
      %v924 = vmul.f32 %v838, %v923
      %v925 = vsub.f32 1.0, %v924
      %v926 = vmul.f32 %v923, %v925
      %v927 = vadd.f32 %v923, %v926
      %vm928 = vweird.f32 %v838
      %vm929 = vweird.f32 %v923
      %vm930 = vmor %vm928, %vm929
      %v931 = vsel %vm930, %v923, %v927
      %v932 = vand.u32 2147483647, %v838
      %vm933 = vcmp.eq.f32.partialorder %v932, 8.507059e+37
      %v934 = vand.u32 %v838, 2147483648
      %v935 = vor.u32 1.1754944e-38, %v934
      %v936 = vsel %vm933, %v935, %v931
      %v937 = vmul.f32 %v776, %v936
      %v938 = vmul.f32 %v778, %v936
      %v939 = vrcp.pop %v841
      %v940 = vmul.f32 %v841, %v939
      %v941 = vsub.f32 1.0, %v940
      %v942 = vmul.f32 %v939, %v941
      %v943 = vadd.f32 %v939, %v942
      %vm944 = vweird.f32 %v841
      %vm945 = vweird.f32 %v939
      %vm946 = vmor %vm944, %vm945
      %v947 = vsel %vm946, %v939, %v943
      %v948 = vand.u32 2147483647, %v841
      %vm949 = vcmp.eq.f32.partialorder %v948, 8.507059e+37
      %v950 = vand.u32 %v841, 2147483648
      %v951 = vor.u32 1.1754944e-38, %v950
      %v952 = vsel %vm949, %v951, %v947
      %v953 = vmul.f32 %v780, %v952
      %v954 = vmul.f32 %v782, %v952
      %v955 = vrcp.pop %v844
      %v956 = vmul.f32 %v844, %v955
      %v957 = vsub.f32 1.0, %v956
      %v958 = vmul.f32 %v955, %v957
      %v959 = vadd.f32 %v955, %v958
      %vm960 = vweird.f32 %v844
      %vm961 = vweird.f32 %v955
      %vm962 = vmor %vm960, %vm961
      %v963 = vsel %vm962, %v955, %v959
      %v964 = vand.u32 2147483647, %v844
      %vm965 = vcmp.eq.f32.partialorder %v964, 8.507059e+37
      %v966 = vand.u32 %v844, 2147483648
      %v967 = vor.u32 1.1754944e-38, %v966
      %v968 = vsel %vm965, %v967, %v963
      %v969 = vmul.f32 %v784, %v968
      %v970 = vmul.f32 %v786, %v968
      %v971 = vrcp.pop %v847
      %v972 = vmul.f32 %v847, %v971
      %v973 = vsub.f32 1.0, %v972
      %v974 = vmul.f32 %v971, %v973
      %v975 = vadd.f32 %v971, %v974
      %vm976 = vweird.f32 %v847
      %vm977 = vweird.f32 %v971
      %vm978 = vmor %vm976, %vm977
      %v979 = vsel %vm978, %v971, %v975
      %v980 = vand.u32 2147483647, %v847
      %vm981 = vcmp.eq.f32.partialorder %v980, 8.507059e+37
      %v982 = vand.u32 %v847, 2147483648
      %v983 = vor.u32 1.1754944e-38, %v982
      %v984 = vsel %vm981, %v983, %v979
      %v985 = vmul.f32 %v788, %v984
      %v986 = vmul.f32 %v790, %v984
      %v987 = vrcp.pop %v850
      %v988 = vmul.f32 %v850, %v987
      %v989 = vsub.f32 1.0, %v988
      %v990 = vmul.f32 %v987, %v989
      %v991 = vadd.f32 %v987, %v990
      %vm992 = vweird.f32 %v850
      %vm993 = vweird.f32 %v987
      %vm994 = vmor %vm992, %vm993
      %v995 = vsel %vm994, %v987, %v991
      %v996 = vand.u32 2147483647, %v850
      %vm997 = vcmp.eq.f32.partialorder %v996, 8.507059e+37
      %v998 = vand.u32 %v850, 2147483648
      %v999 = vor.u32 1.1754944e-38, %v998
      %v1000 = vsel %vm997, %v999, %v995
      %v1001 = vmul.f32 %v792, %v1000
      %v1002 = vmul.f32 %v794, %v1000
      %v1003 = vrcp.pop %v853
      %v1004 = vmul.f32 %v853, %v1003
      %v1005 = vsub.f32 1.0, %v1004
      %v1006 = vmul.f32 %v1003, %v1005
      %v1007 = vadd.f32 %v1003, %v1006
      %vm1008 = vweird.f32 %v853
      %vm1009 = vweird.f32 %v1003
      %vm1010 = vmor %vm1008, %vm1009
      %v1011 = vsel %vm1010, %v1003, %v1007
      %v1012 = vand.u32 2147483647, %v853
      %vm1013 = vcmp.eq.f32.partialorder %v1012, 8.507059e+37
      %v1014 = vand.u32 %v853, 2147483648
      %v1015 = vor.u32 1.1754944e-38, %v1014
      %v1016 = vsel %vm1013, %v1015, %v1011
      %v1017 = vmul.f32 %v796, %v1016
      %v1018 = vmul.f32 %v798, %v1016
      %v1019 = vrcp.pop %v856
      %v1020 = vmul.f32 %v856, %v1019
      %v1021 = vsub.f32 1.0, %v1020
      %v1022 = vmul.f32 %v1019, %v1021
      %v1023 = vadd.f32 %v1019, %v1022
      %vm1024 = vweird.f32 %v856
      %vm1025 = vweird.f32 %v1019
      %vm1026 = vmor %vm1024, %vm1025
      %v1027 = vsel %vm1026, %v1019, %v1023
      %v1028 = vand.u32 2147483647, %v856
      %vm1029 = vcmp.eq.f32.partialorder %v1028, 8.507059e+37
      %v1030 = vand.u32 %v856, 2147483648
      %v1031 = vor.u32 1.1754944e-38, %v1030
      %v1032 = vsel %vm1029, %v1031, %v1027
      %v1033 = vmul.f32 %v800, %v1032
      %v1034 = vmul.f32 %v802, %v1032
      %v1035 = vrcp.pop %v859
      %v1036 = vmul.f32 %v859, %v1035
      %v1037 = vsub.f32 1.0, %v1036
      %v1038 = vmul.f32 %v1035, %v1037
      %v1039 = vadd.f32 %v1035, %v1038
      %vm1040 = vweird.f32 %v859
      %vm1041 = vweird.f32 %v1035
      %vm1042 = vmor %vm1040, %vm1041
      %v1043 = vsel %vm1042, %v1035, %v1039
      %v1044 = vand.u32 2147483647, %v859
      %vm1045 = vcmp.eq.f32.partialorder %v1044, 8.507059e+37
      %v1046 = vand.u32 %v859, 2147483648
      %v1047 = vor.u32 1.1754944e-38, %v1046
      %v1048 = vsel %vm1045, %v1047, %v1043
      %v1049 = vmul.f32 %v804, %v1048
      %v1050 = vmul.f32 %v806, %v1048
      %v1051 = vrcp.pop %v862
      %v1052 = vmul.f32 %v862, %v1051
      %v1053 = vsub.f32 1.0, %v1052
      %v1054 = vmul.f32 %v1051, %v1053
      %v1055 = vadd.f32 %v1051, %v1054
      %vm1056 = vweird.f32 %v862
      %vm1057 = vweird.f32 %v1051
      %vm1058 = vmor %vm1056, %vm1057
      %v1059 = vsel %vm1058, %v1051, %v1055
      %v1060 = vand.u32 2147483647, %v862
      %vm1061 = vcmp.eq.f32.partialorder %v1060, 8.507059e+37
      %v1062 = vand.u32 %v862, 2147483648
      %v1063 = vor.u32 1.1754944e-38, %v1062
      %v1064 = vsel %vm1061, %v1063, %v1059
      %v1065 = vmul.f32 %v808, %v1064
      %v1066 = vmul.f32 %v810, %v1064
      %v1067 = vrcp.pop %v865
      %v1068 = vmul.f32 %v865, %v1067
      %v1069 = vsub.f32 1.0, %v1068
      %v1070 = vmul.f32 %v1067, %v1069
      %v1071 = vadd.f32 %v1067, %v1070
      %vm1072 = vweird.f32 %v865
      %vm1073 = vweird.f32 %v1067
      %vm1074 = vmor %vm1072, %vm1073
      %v1075 = vsel %vm1074, %v1067, %v1071
      %v1076 = vand.u32 2147483647, %v865
      %vm1077 = vcmp.eq.f32.partialorder %v1076, 8.507059e+37
      %v1078 = vand.u32 %v865, 2147483648
      %v1079 = vor.u32 1.1754944e-38, %v1078
      %v1080 = vsel %vm1077, %v1079, %v1075
      %v1081 = vmul.f32 %v812, %v1080
      %v1082 = vmul.f32 %v814, %v1080
      %v1083 = vrcp.pop %v868
      %v1084 = vmul.f32 %v868, %v1083
      %v1085 = vsub.f32 1.0, %v1084
      %v1086 = vmul.f32 %v1083, %v1085
      %v1087 = vadd.f32 %v1083, %v1086
      %vm1088 = vweird.f32 %v868
      %vm1089 = vweird.f32 %v1083
      %vm1090 = vmor %vm1088, %vm1089
      %v1091 = vsel %vm1090, %v1083, %v1087
      %v1092 = vand.u32 2147483647, %v868
      %vm1093 = vcmp.eq.f32.partialorder %v1092, 8.507059e+37
      %v1094 = vand.u32 %v868, 2147483648
      %v1095 = vor.u32 1.1754944e-38, %v1094
      %v1096 = vsel %vm1093, %v1095, %v1091
      %v1097 = vmul.f32 %v816, %v1096
      %v1098 = vmul.f32 %v818, %v1096
      %v1099 = vrcp.pop %v871
      %v1100 = vmul.f32 %v871, %v1099
      %v1101 = vsub.f32 1.0, %v1100
      %v1102 = vmul.f32 %v1099, %v1101
      %v1103 = vadd.f32 %v1099, %v1102
      %vm1104 = vweird.f32 %v871
      %vm1105 = vweird.f32 %v1099
      %vm1106 = vmor %vm1104, %vm1105
      %v1107 = vsel %vm1106, %v1099, %v1103
      %v1108 = vand.u32 2147483647, %v871
      %vm1109 = vcmp.eq.f32.partialorder %v1108, 8.507059e+37
      %v1110 = vand.u32 %v871, 2147483648
      %v1111 = vor.u32 1.1754944e-38, %v1110
      %v1112 = vsel %vm1109, %v1111, %v1107
      %v1113 = vmul.f32 %v820, %v1112
      %v1114 = vmul.f32 %v822, %v1112
      %v1115 = vrcp.pop %v874
      %v1116 = vmul.f32 %v874, %v1115
      %v1117 = vsub.f32 1.0, %v1116
      %v1118 = vmul.f32 %v1115, %v1117
      %v1119 = vadd.f32 %v1115, %v1118
      %vm1120 = vweird.f32 %v874
      %vm1121 = vweird.f32 %v1115
      %vm1122 = vmor %vm1120, %vm1121
      %v1123 = vsel %vm1122, %v1115, %v1119
      %v1124 = vand.u32 2147483647, %v874
      %vm1125 = vcmp.eq.f32.partialorder %v1124, 8.507059e+37
      %v1126 = vand.u32 %v874, 2147483648
      %v1127 = vor.u32 1.1754944e-38, %v1126
      %v1128 = vsel %vm1125, %v1127, %v1123
      %v1129 = vmul.f32 %v824, %v1128
      %v1130 = vmul.f32 %v826, %v1128
      %1131 = vmatpush.xpose.msra.mxu0 %v1129
      %1132 = vmatpush.xpose.msra.mxu0 %v1113
      %1133 = vmatpush.xpose.msra.mxu0 %v1097
      %1134 = vmatpush.xpose.msra.mxu0 %v1081
      %1135 = vmatpush.xpose.msra.mxu0 %v1065
      %1136 = vmatpush.xpose.msra.mxu0 %v1049
      %1137 = vmatpush.xpose.msra.mxu0 %v1033
      %1138 = vmatpush.xpose.msra.mxu0 %v1017
      %1139 = vmatpush.xpose.msra.mxu0 %v1001
      %1140 = vmatpush.xpose.msra.mxu0 %v985
      %1141 = vmatpush.xpose.msra.mxu0 %v969
      %1142 = vmatpush.xpose.msra.mxu0 %v953
      %1143 = vmatpush.xpose.msra.mxu0 %v937
      %1144 = vmatpush.xpose.msra.mxu0 %v921
      %1145 = vmatpush.xpose.msra.mxu0 %v905
      %1146 = vmatpush.xpose.msra.mxu0 %v889
      %1147 = vmatmul.f32.gmra.mxu0 %v432
      %v1148 = vpop.f32.mrf.mxu0
      %v1149 = vadd.f32 0.0, %v1148
      %1150 = vdwg.mxu0
      %1151 = vmatpush.xpose.msra.mxu0 %v1130
      %1152 = vmatpush.xpose.msra.mxu0 %v1114
      %1153 = vmatpush.xpose.msra.mxu0 %v1098
      %1154 = vmatpush.xpose.msra.mxu0 %v1082
      %1155 = vmatpush.xpose.msra.mxu0 %v1066
      %1156 = vmatpush.xpose.msra.mxu0 %v1050
      %1157 = vmatpush.xpose.msra.mxu0 %v1034
      %1158 = vmatpush.xpose.msra.mxu0 %v1018
      %1159 = vmatpush.xpose.msra.mxu0 %v1002
      %1160 = vmatpush.xpose.msra.mxu0 %v986
      %1161 = vmatpush.xpose.msra.mxu0 %v970
      %1162 = vmatpush.xpose.msra.mxu0 %v954
      %1163 = vmatpush.xpose.msra.mxu0 %v938
      %1164 = vmatpush.xpose.msra.mxu0 %v922
      %1165 = vmatpush.xpose.msra.mxu0 %v906
      %1166 = vmatpush.xpose.msra.mxu0 %v890
      %1167 = vmatmul.f32.gmra.mxu0 %v455
      %v1168 = vpop.f32.mrf.mxu0
      %v1169 = vadd.f32 %v1149, %v1168
      %1170 = vdwg.mxu0
      %v1172 = vsel %vm497, %v489, 0
      %v1175 = vsel %vm546, %v1169, 0
      %1177 = vmatpush.msra.mxu0 0.0
      %1178 = vmatpush.msra.mxu0 0.0
      %1179 = vmatpush.msra.mxu0 0.0
      %1180 = vmatpush.msra.mxu0 0.0
      %1181 = vmatpush.msra.mxu0 0.0
      %1182 = vmatpush.msra.mxu0 0.0
      %1183 = vmatpush.msra.mxu0 0.0
      %1184 = vmatpush.msra.mxu0 0.0
      %1185 = vmatpush.msra.mxu0 0.0
      %1186 = vmatpush.msra.mxu0 0.0
      %1187 = vmatpush.msra.mxu0 0.0
      %1188 = vmatpush.msra.mxu0 0.0
      %1189 = vmatpush.msra.mxu0 0.0
      %1190 = vmatpush.msra.mxu0 0.0
      %1191 = vmatpush.msra.mxu0 0.0
      %1192 = vmatpush.msra.mxu0 %v1175
      %1193 = vmatmul.f32.gmra.mxu0 %v1172
      %v1194 = vpop.f32.mrf.mxu0
      %v1195 = vadd.f32 0.0, %v1194
      %1196 = vdwg.mxu0
      %v1197 = vadd.f32 %v496, %v1195
      %1198 = vrot.lane.b32.xlu0 %v473, 124
      %v1199 = vpop.permute.xlu0 %1198
      %1200 = vrot.lane.b32.xlu0 %v474, 124
      %v1201 = vpop.permute.xlu0 %1200
      %1202 = vrot.lane.b32.xlu0 %v475, 124
      %v1203 = vpop.permute.xlu0 %1202
      %1204 = vrot.lane.b32.xlu0 %v476, 124
      %v1205 = vpop.permute.xlu0 %1204
      %1206 = vrot.lane.b32.xlu0 %v477, 124
      %v1207 = vpop.permute.xlu0 %1206
      %1208 = vrot.lane.b32.xlu0 %v478, 124
      %v1209 = vpop.permute.xlu0 %1208
      %1210 = vrot.lane.b32.xlu0 %v479, 124
      %v1211 = vpop.permute.xlu0 %1210
      %1212 = vrot.lane.b32.xlu0 %v480, 124
      %v1213 = vpop.permute.xlu0 %1212
      %1214 = vrot.lane.b32.xlu0 %v481, 124
      %v1215 = vpop.permute.xlu0 %1214
      %1216 = vrot.lane.b32.xlu0 %v482, 124
      %v1217 = vpop.permute.xlu0 %1216
      %1218 = vrot.lane.b32.xlu0 %v483, 124
      %v1219 = vpop.permute.xlu0 %1218
      %1220 = vrot.lane.b32.xlu0 %v484, 124
      %v1221 = vpop.permute.xlu0 %1220
      %1222 = vrot.lane.b32.xlu0 %v485, 124
      %v1223 = vpop.permute.xlu0 %1222
      %1224 = vrot.lane.b32.xlu0 %v486, 124
      %v1225 = vpop.permute.xlu0 %1224
      %1226 = vrot.lane.b32.xlu0 %v487, 124
      %v1227 = vpop.permute.xlu0 %1226
      %1228 = vrot.lane.b32.xlu0 %v488, 124
      %v1229 = vpop.permute.xlu0 %1228
      %v1230 = vrot.slane %v429, 4
      %v1231 = vrot.slane %v452, 4
      %v1232 = vsel %vm497, %v1199, 0
      %v1234 = vsel %vm497, %v1201, 0
      %v1236 = vsel %vm497, %v1203, 0
      %v1238 = vsel %vm497, %v1205, 0
      %v1240 = vsel %vm497, %v1207, 0
      %v1242 = vsel %vm497, %v1209, 0
      %v1244 = vsel %vm497, %v1211, 0
      %v1246 = vsel %vm497, %v1213, 0
      %v1248 = vsel %vm497, %v1215, 0
      %v1250 = vsel %vm497, %v1217, 0
      %v1252 = vsel %vm497, %v1219, 0
      %v1254 = vsel %vm497, %v1221, 0
      %v1256 = vsel %vm497, %v1223, 0
      %v1258 = vsel %vm497, %v1225, 0
      %v1260 = vsel %vm497, %v1227, 0
      %v1262 = vsel %vm497, %v1229, 0
      %v1264 = vsel %vm546, %v1230, 0
      %v1266 = vsel %vm546, %v1231, 0
      %1268 = vmatpush.msra.mxu0 0.0
      %1269 = vmatpush.msra.mxu0 0.0
      %1270 = vmatpush.msra.mxu0 0.0
      %1271 = vmatpush.msra.mxu0 0.0
      %1272 = vmatpush.msra.mxu0 0.0
      %1273 = vmatpush.msra.mxu0 0.0
      %1274 = vmatpush.msra.mxu0 0.0
      %1275 = vmatpush.msra.mxu0 0.0
      %1276 = vmatpush.msra.mxu0 0.0
      %1277 = vmatpush.msra.mxu0 0.0
      %1278 = vmatpush.msra.mxu0 0.0
      %1279 = vmatpush.msra.mxu0 0.0
      %1280 = vmatpush.msra.mxu0 0.0
      %1281 = vmatpush.msra.mxu0 0.0
      %1282 = vmatpush.msra.mxu0 0.0
      %1283 = vmatpush.msra.mxu0 %v1264
      %1284 = vmatmul.f32.gmra.mxu0 %v1232
      %v1285 = vpop.f32.mrf.mxu0
      %v1286 = vadd.f32 0.0, %v1285
      %1287 = vmatmul.f32.gmra.mxu0 %v1234
      %v1288 = vpop.f32.mrf.mxu0
      %v1289 = vadd.f32 0.0, %v1288
      %1290 = vmatmul.f32.gmra.mxu0 %v1236
      %v1291 = vpop.f32.mrf.mxu0
      %v1292 = vadd.f32 0.0, %v1291
      %1293 = vmatmul.f32.gmra.mxu0 %v1238
      %v1294 = vpop.f32.mrf.mxu0
      %v1295 = vadd.f32 0.0, %v1294
      %1296 = vmatmul.f32.gmra.mxu0 %v1240
      %v1297 = vpop.f32.mrf.mxu0
      %v1298 = vadd.f32 0.0, %v1297
      %1299 = vmatmul.f32.gmra.mxu0 %v1242
      %v1300 = vpop.f32.mrf.mxu0
      %v1301 = vadd.f32 0.0, %v1300
      %1302 = vmatmul.f32.gmra.mxu0 %v1244
      %v1303 = vpop.f32.mrf.mxu0
      %v1304 = vadd.f32 0.0, %v1303
      %1305 = vmatmul.f32.gmra.mxu0 %v1246
      %v1306 = vpop.f32.mrf.mxu0
      %v1307 = vadd.f32 0.0, %v1306
      %1308 = vmatmul.f32.gmra.mxu0 %v1248
      %v1309 = vpop.f32.mrf.mxu0
      %v1310 = vadd.f32 0.0, %v1309
      %1311 = vmatmul.f32.gmra.mxu0 %v1250
      %v1312 = vpop.f32.mrf.mxu0
      %v1313 = vadd.f32 0.0, %v1312
      %1314 = vmatmul.f32.gmra.mxu0 %v1252
      %v1315 = vpop.f32.mrf.mxu0
      %v1316 = vadd.f32 0.0, %v1315
      %1317 = vmatmul.f32.gmra.mxu0 %v1254
      %v1318 = vpop.f32.mrf.mxu0
      %v1319 = vadd.f32 0.0, %v1318
      %1320 = vmatmul.f32.gmra.mxu0 %v1256
      %v1321 = vpop.f32.mrf.mxu0
      %v1322 = vadd.f32 0.0, %v1321
      %1323 = vmatmul.f32.gmra.mxu0 %v1258
      %v1324 = vpop.f32.mrf.mxu0
      %v1325 = vadd.f32 0.0, %v1324
      %1326 = vmatmul.f32.gmra.mxu0 %v1260
      %v1327 = vpop.f32.mrf.mxu0
      %v1328 = vadd.f32 0.0, %v1327
      %1329 = vmatmul.f32.gmra.mxu0 %v1262
      %v1330 = vpop.f32.mrf.mxu0
      %v1331 = vadd.f32 0.0, %v1330
      %1332 = vdwg.mxu0
      %1333 = vmatpush.msra.mxu0 0.0
      %1334 = vmatpush.msra.mxu0 0.0
      %1335 = vmatpush.msra.mxu0 0.0
      %1336 = vmatpush.msra.mxu0 0.0
      %1337 = vmatpush.msra.mxu0 0.0
      %1338 = vmatpush.msra.mxu0 0.0
      %1339 = vmatpush.msra.mxu0 0.0
      %1340 = vmatpush.msra.mxu0 0.0
      %1341 = vmatpush.msra.mxu0 0.0
      %1342 = vmatpush.msra.mxu0 0.0
      %1343 = vmatpush.msra.mxu0 0.0
      %1344 = vmatpush.msra.mxu0 0.0
      %1345 = vmatpush.msra.mxu0 0.0
      %1346 = vmatpush.msra.mxu0 0.0
      %1347 = vmatpush.msra.mxu0 0.0
      %1348 = vmatpush.msra.mxu0 %v1266
      %1349 = vmatmul.f32.gmra.mxu0 %v1232
      %v1350 = vpop.f32.mrf.mxu0
      %v1351 = vadd.f32 0.0, %v1350
      %1352 = vmatmul.f32.gmra.mxu0 %v1234
      %v1353 = vpop.f32.mrf.mxu0
      %v1354 = vadd.f32 0.0, %v1353
      %1355 = vmatmul.f32.gmra.mxu0 %v1236
      %v1356 = vpop.f32.mrf.mxu0
      %v1357 = vadd.f32 0.0, %v1356
      %1358 = vmatmul.f32.gmra.mxu0 %v1238
      %v1359 = vpop.f32.mrf.mxu0
      %v1360 = vadd.f32 0.0, %v1359
      %1361 = vmatmul.f32.gmra.mxu0 %v1240
      %v1362 = vpop.f32.mrf.mxu0
      %v1363 = vadd.f32 0.0, %v1362
      %1364 = vmatmul.f32.gmra.mxu0 %v1242
      %v1365 = vpop.f32.mrf.mxu0
      %v1366 = vadd.f32 0.0, %v1365
      %1367 = vmatmul.f32.gmra.mxu0 %v1244
      %v1368 = vpop.f32.mrf.mxu0
      %v1369 = vadd.f32 0.0, %v1368
      %1370 = vmatmul.f32.gmra.mxu0 %v1246
      %v1371 = vpop.f32.mrf.mxu0
      %v1372 = vadd.f32 0.0, %v1371
      %1373 = vmatmul.f32.gmra.mxu0 %v1248
      %v1374 = vpop.f32.mrf.mxu0
      %v1375 = vadd.f32 0.0, %v1374
      %1376 = vmatmul.f32.gmra.mxu0 %v1250
      %v1377 = vpop.f32.mrf.mxu0
      %v1378 = vadd.f32 0.0, %v1377
      %1379 = vmatmul.f32.gmra.mxu0 %v1252
      %v1380 = vpop.f32.mrf.mxu0
      %v1381 = vadd.f32 0.0, %v1380
      %1382 = vmatmul.f32.gmra.mxu0 %v1254
      %v1383 = vpop.f32.mrf.mxu0
      %v1384 = vadd.f32 0.0, %v1383
      %1385 = vmatmul.f32.gmra.mxu0 %v1256
      %v1386 = vpop.f32.mrf.mxu0
      %v1387 = vadd.f32 0.0, %v1386
      %1388 = vmatmul.f32.gmra.mxu0 %v1258
      %v1389 = vpop.f32.mrf.mxu0
      %v1390 = vadd.f32 0.0, %v1389
      %1391 = vmatmul.f32.gmra.mxu0 %v1260
      %v1392 = vpop.f32.mrf.mxu0
      %v1393 = vadd.f32 0.0, %v1392
      %1394 = vmatmul.f32.gmra.mxu0 %v1262
      %v1395 = vpop.f32.mrf.mxu0
      %v1396 = vadd.f32 0.0, %v1395
      %1397 = vdwg.mxu0
      %v1398 = vmax.f32 %v1286, %v1351
      %1399 = vmax.xlane.f32.xlu0 %v1398
      %v1400 = vpop.xlane.xlu0 %1399
      %v1401 = vmax.f32 %v1289, %v1354
      %1402 = vmax.xlane.f32.xlu0 %v1401
      %v1403 = vpop.xlane.xlu0 %1402
      %v1404 = vmax.f32 %v1292, %v1357
      %1405 = vmax.xlane.f32.xlu0 %v1404
      %v1406 = vpop.xlane.xlu0 %1405
      %v1407 = vmax.f32 %v1295, %v1360
      %1408 = vmax.xlane.f32.xlu0 %v1407
      %v1409 = vpop.xlane.xlu0 %1408
      %v1410 = vmax.f32 %v1298, %v1363
      %1411 = vmax.xlane.f32.xlu0 %v1410
      %v1412 = vpop.xlane.xlu0 %1411
      %v1413 = vmax.f32 %v1301, %v1366
      %1414 = vmax.xlane.f32.xlu0 %v1413
      %v1415 = vpop.xlane.xlu0 %1414
      %v1416 = vmax.f32 %v1304, %v1369
      %1417 = vmax.xlane.f32.xlu0 %v1416
      %v1418 = vpop.xlane.xlu0 %1417
      %v1419 = vmax.f32 %v1307, %v1372
      %1420 = vmax.xlane.f32.xlu0 %v1419
      %v1421 = vpop.xlane.xlu0 %1420
      %v1422 = vmax.f32 %v1310, %v1375
      %1423 = vmax.xlane.f32.xlu0 %v1422
      %v1424 = vpop.xlane.xlu0 %1423
      %v1425 = vmax.f32 %v1313, %v1378
      %1426 = vmax.xlane.f32.xlu0 %v1425
      %v1427 = vpop.xlane.xlu0 %1426
      %v1428 = vmax.f32 %v1316, %v1381
      %1429 = vmax.xlane.f32.xlu0 %v1428
      %v1430 = vpop.xlane.xlu0 %1429
      %v1431 = vmax.f32 %v1319, %v1384
      %1432 = vmax.xlane.f32.xlu0 %v1431
      %v1433 = vpop.xlane.xlu0 %1432
      %v1434 = vmax.f32 %v1322, %v1387
      %1435 = vmax.xlane.f32.xlu0 %v1434
      %v1436 = vpop.xlane.xlu0 %1435
      %v1437 = vmax.f32 %v1325, %v1390
      %1438 = vmax.xlane.f32.xlu0 %v1437
      %v1439 = vpop.xlane.xlu0 %1438
      %v1440 = vmax.f32 %v1328, %v1393
      %1441 = vmax.xlane.f32.xlu0 %v1440
      %v1442 = vpop.xlane.xlu0 %1441
      %v1443 = vmax.f32 %v1331, %v1396
      %1444 = vmax.xlane.f32.xlu0 %v1443
      %v1445 = vpop.xlane.xlu0 %1444
      %v1446 = vsub.f32 %v1286, %v1400
      %v1447 = vsub.f32 %v1351, %v1400
      %v1448 = vsub.f32 %v1289, %v1403
      %v1449 = vsub.f32 %v1354, %v1403
      %v1450 = vsub.f32 %v1292, %v1406
      %v1451 = vsub.f32 %v1357, %v1406
      %v1452 = vsub.f32 %v1295, %v1409
      %v1453 = vsub.f32 %v1360, %v1409
      %v1454 = vsub.f32 %v1298, %v1412
      %v1455 = vsub.f32 %v1363, %v1412
      %v1456 = vsub.f32 %v1301, %v1415
      %v1457 = vsub.f32 %v1366, %v1415
      %v1458 = vsub.f32 %v1304, %v1418
      %v1459 = vsub.f32 %v1369, %v1418
      %v1460 = vsub.f32 %v1307, %v1421
      %v1461 = vsub.f32 %v1372, %v1421
      %v1462 = vsub.f32 %v1310, %v1424
      %v1463 = vsub.f32 %v1375, %v1424
      %v1464 = vsub.f32 %v1313, %v1427
      %v1465 = vsub.f32 %v1378, %v1427
      %v1466 = vsub.f32 %v1316, %v1430
      %v1467 = vsub.f32 %v1381, %v1430
      %v1468 = vsub.f32 %v1319, %v1433
      %v1469 = vsub.f32 %v1384, %v1433
      %v1470 = vsub.f32 %v1322, %v1436
      %v1471 = vsub.f32 %v1387, %v1436
      %v1472 = vsub.f32 %v1325, %v1439
      %v1473 = vsub.f32 %v1390, %v1439
      %v1474 = vsub.f32 %v1328, %v1442
      %v1475 = vsub.f32 %v1393, %v1442
      %v1476 = vsub.f32 %v1331, %v1445
      %v1477 = vsub.f32 %v1396, %v1445
      %v1478 = vmul.f32 %v1446, 1.442695
      %v1479 = vpow.pop %v1478
      %v1480 = vmul.f32 %v1447, 1.442695
      %v1481 = vpow.pop %v1480
      %v1482 = vmul.f32 %v1448, 1.442695
      %v1483 = vpow.pop %v1482
      %v1484 = vmul.f32 %v1449, 1.442695
      %v1485 = vpow.pop %v1484
      %v1486 = vmul.f32 %v1450, 1.442695
      %v1487 = vpow.pop %v1486
      %v1488 = vmul.f32 %v1451, 1.442695
      %v1489 = vpow.pop %v1488
      %v1490 = vmul.f32 %v1452, 1.442695
      %v1491 = vpow.pop %v1490
      %v1492 = vmul.f32 %v1453, 1.442695
      %v1493 = vpow.pop %v1492
      %v1494 = vmul.f32 %v1454, 1.442695
      %v1495 = vpow.pop %v1494
      %v1496 = vmul.f32 %v1455, 1.442695
      %v1497 = vpow.pop %v1496
      %v1498 = vmul.f32 %v1456, 1.442695
      %v1499 = vpow.pop %v1498
      %v1500 = vmul.f32 %v1457, 1.442695
      %v1501 = vpow.pop %v1500
      %v1502 = vmul.f32 %v1458, 1.442695
      %v1503 = vpow.pop %v1502
      %v1504 = vmul.f32 %v1459, 1.442695
      %v1505 = vpow.pop %v1504
      %v1506 = vmul.f32 %v1460, 1.442695
      %v1507 = vpow.pop %v1506
      %v1508 = vmul.f32 %v1461, 1.442695
      %v1509 = vpow.pop %v1508
      %v1510 = vmul.f32 %v1462, 1.442695
      %v1511 = vpow.pop %v1510
      %v1512 = vmul.f32 %v1463, 1.442695
      %v1513 = vpow.pop %v1512
      %v1514 = vmul.f32 %v1464, 1.442695
      %v1515 = vpow.pop %v1514
      %v1516 = vmul.f32 %v1465, 1.442695
      %v1517 = vpow.pop %v1516
      %v1518 = vmul.f32 %v1466, 1.442695
      %v1519 = vpow.pop %v1518
      %v1520 = vmul.f32 %v1467, 1.442695
      %v1521 = vpow.pop %v1520
      %v1522 = vmul.f32 %v1468, 1.442695
      %v1523 = vpow.pop %v1522
      %v1524 = vmul.f32 %v1469, 1.442695
      %v1525 = vpow.pop %v1524
      %v1526 = vmul.f32 %v1470, 1.442695
      %v1527 = vpow.pop %v1526
      %v1528 = vmul.f32 %v1471, 1.442695
      %v1529 = vpow.pop %v1528
      %v1530 = vmul.f32 %v1472, 1.442695
      %v1531 = vpow.pop %v1530
      %v1532 = vmul.f32 %v1473, 1.442695
      %v1533 = vpow.pop %v1532
      %v1534 = vmul.f32 %v1474, 1.442695
      %v1535 = vpow.pop %v1534
      %v1536 = vmul.f32 %v1475, 1.442695
      %v1537 = vpow.pop %v1536
      %v1538 = vmul.f32 %v1476, 1.442695
      %v1539 = vpow.pop %v1538
      %v1540 = vmul.f32 %v1477, 1.442695
      %v1541 = vpow.pop %v1540
      %v1542 = vadd.f32 %v1479, %v1481
      %1543 = vadd.xlane.f32.xlu0 %v1542
      %v1544 = vpop.xlane.xlu0 %1543
      %v1545 = vadd.f32 %v1483, %v1485
      %1546 = vadd.xlane.f32.xlu0 %v1545
      %v1547 = vpop.xlane.xlu0 %1546
      %v1548 = vadd.f32 %v1487, %v1489
      %1549 = vadd.xlane.f32.xlu0 %v1548
      %v1550 = vpop.xlane.xlu0 %1549
      %v1551 = vadd.f32 %v1491, %v1493
      %1552 = vadd.xlane.f32.xlu0 %v1551
      %v1553 = vpop.xlane.xlu0 %1552
      %v1554 = vadd.f32 %v1495, %v1497
      %1555 = vadd.xlane.f32.xlu0 %v1554
      %v1556 = vpop.xlane.xlu0 %1555
      %v1557 = vadd.f32 %v1499, %v1501
      %1558 = vadd.xlane.f32.xlu0 %v1557
      %v1559 = vpop.xlane.xlu0 %1558
      %v1560 = vadd.f32 %v1503, %v1505
      %1561 = vadd.xlane.f32.xlu0 %v1560
      %v1562 = vpop.xlane.xlu0 %1561
      %v1563 = vadd.f32 %v1507, %v1509
      %1564 = vadd.xlane.f32.xlu0 %v1563
      %v1565 = vpop.xlane.xlu0 %1564
      %v1566 = vadd.f32 %v1511, %v1513
      %1567 = vadd.xlane.f32.xlu0 %v1566
      %v1568 = vpop.xlane.xlu0 %1567
      %v1569 = vadd.f32 %v1515, %v1517
      %1570 = vadd.xlane.f32.xlu0 %v1569
      %v1571 = vpop.xlane.xlu0 %1570
      %v1572 = vadd.f32 %v1519, %v1521
      %1573 = vadd.xlane.f32.xlu0 %v1572
      %v1574 = vpop.xlane.xlu0 %1573
      %v1575 = vadd.f32 %v1523, %v1525
      %1576 = vadd.xlane.f32.xlu0 %v1575
      %v1577 = vpop.xlane.xlu0 %1576
      %v1578 = vadd.f32 %v1527, %v1529
      %1579 = vadd.xlane.f32.xlu0 %v1578
      %v1580 = vpop.xlane.xlu0 %1579
      %v1581 = vadd.f32 %v1531, %v1533
      %1582 = vadd.xlane.f32.xlu0 %v1581
      %v1583 = vpop.xlane.xlu0 %1582
      %v1584 = vadd.f32 %v1535, %v1537
      %1585 = vadd.xlane.f32.xlu0 %v1584
      %v1586 = vpop.xlane.xlu0 %1585
      %v1587 = vadd.f32 %v1539, %v1541
      %1588 = vadd.xlane.f32.xlu0 %v1587
      %v1589 = vpop.xlane.xlu0 %1588
      %v1590 = vrcp.pop %v1544
      %v1591 = vmul.f32 %v1544, %v1590
      %v1592 = vsub.f32 1.0, %v1591
      %v1593 = vmul.f32 %v1590, %v1592
      %v1594 = vadd.f32 %v1590, %v1593
      %vm1595 = vweird.f32 %v1544
      %vm1596 = vweird.f32 %v1590
      %vm1597 = vmor %vm1595, %vm1596
      %v1598 = vsel %vm1597, %v1590, %v1594
      %v1599 = vand.u32 2147483647, %v1544
      %vm1600 = vcmp.eq.f32.partialorder %v1599, 8.507059e+37
      %v1601 = vand.u32 %v1544, 2147483648
      %v1602 = vor.u32 1.1754944e-38, %v1601
      %v1603 = vsel %vm1600, %v1602, %v1598
      %v1604 = vmul.f32 %v1479, %v1603
      %v1605 = vmul.f32 %v1481, %v1603
      %v1606 = vrcp.pop %v1547
      %v1607 = vmul.f32 %v1547, %v1606
      %v1608 = vsub.f32 1.0, %v1607
      %v1609 = vmul.f32 %v1606, %v1608
      %v1610 = vadd.f32 %v1606, %v1609
      %vm1611 = vweird.f32 %v1547
      %vm1612 = vweird.f32 %v1606
      %vm1613 = vmor %vm1611, %vm1612
      %v1614 = vsel %vm1613, %v1606, %v1610
      %v1615 = vand.u32 2147483647, %v1547
      %vm1616 = vcmp.eq.f32.partialorder %v1615, 8.507059e+37
      %v1617 = vand.u32 %v1547, 2147483648
      %v1618 = vor.u32 1.1754944e-38, %v1617
      %v1619 = vsel %vm1616, %v1618, %v1614
      %v1620 = vmul.f32 %v1483, %v1619
      %v1621 = vmul.f32 %v1485, %v1619
      %v1622 = vrcp.pop %v1550
      %v1623 = vmul.f32 %v1550, %v1622
      %v1624 = vsub.f32 1.0, %v1623
      %v1625 = vmul.f32 %v1622, %v1624
      %v1626 = vadd.f32 %v1622, %v1625
      %vm1627 = vweird.f32 %v1550
      %vm1628 = vweird.f32 %v1622
      %vm1629 = vmor %vm1627, %vm1628
      %v1630 = vsel %vm1629, %v1622, %v1626
      %v1631 = vand.u32 2147483647, %v1550
      %vm1632 = vcmp.eq.f32.partialorder %v1631, 8.507059e+37
      %v1633 = vand.u32 %v1550, 2147483648
      %v1634 = vor.u32 1.1754944e-38, %v1633
      %v1635 = vsel %vm1632, %v1634, %v1630
      %v1636 = vmul.f32 %v1487, %v1635
      %v1637 = vmul.f32 %v1489, %v1635
      %v1638 = vrcp.pop %v1553
      %v1639 = vmul.f32 %v1553, %v1638
      %v1640 = vsub.f32 1.0, %v1639
      %v1641 = vmul.f32 %v1638, %v1640
      %v1642 = vadd.f32 %v1638, %v1641
      %vm1643 = vweird.f32 %v1553
      %vm1644 = vweird.f32 %v1638
      %vm1645 = vmor %vm1643, %vm1644
      %v1646 = vsel %vm1645, %v1638, %v1642
      %v1647 = vand.u32 2147483647, %v1553
      %vm1648 = vcmp.eq.f32.partialorder %v1647, 8.507059e+37
      %v1649 = vand.u32 %v1553, 2147483648
      %v1650 = vor.u32 1.1754944e-38, %v1649
      %v1651 = vsel %vm1648, %v1650, %v1646
      %v1652 = vmul.f32 %v1491, %v1651
      %v1653 = vmul.f32 %v1493, %v1651
      %v1654 = vrcp.pop %v1556
      %v1655 = vmul.f32 %v1556, %v1654
      %v1656 = vsub.f32 1.0, %v1655
      %v1657 = vmul.f32 %v1654, %v1656
      %v1658 = vadd.f32 %v1654, %v1657
      %vm1659 = vweird.f32 %v1556
      %vm1660 = vweird.f32 %v1654
      %vm1661 = vmor %vm1659, %vm1660
      %v1662 = vsel %vm1661, %v1654, %v1658
      %v1663 = vand.u32 2147483647, %v1556
      %vm1664 = vcmp.eq.f32.partialorder %v1663, 8.507059e+37
      %v1665 = vand.u32 %v1556, 2147483648
      %v1666 = vor.u32 1.1754944e-38, %v1665
      %v1667 = vsel %vm1664, %v1666, %v1662
      %v1668 = vmul.f32 %v1495, %v1667
      %v1669 = vmul.f32 %v1497, %v1667
      %v1670 = vrcp.pop %v1559
      %v1671 = vmul.f32 %v1559, %v1670
      %v1672 = vsub.f32 1.0, %v1671
      %v1673 = vmul.f32 %v1670, %v1672
      %v1674 = vadd.f32 %v1670, %v1673
      %vm1675 = vweird.f32 %v1559
      %vm1676 = vweird.f32 %v1670
      %vm1677 = vmor %vm1675, %vm1676
      %v1678 = vsel %vm1677, %v1670, %v1674
      %v1679 = vand.u32 2147483647, %v1559
      %vm1680 = vcmp.eq.f32.partialorder %v1679, 8.507059e+37
      %v1681 = vand.u32 %v1559, 2147483648
      %v1682 = vor.u32 1.1754944e-38, %v1681
      %v1683 = vsel %vm1680, %v1682, %v1678
      %v1684 = vmul.f32 %v1499, %v1683
      %v1685 = vmul.f32 %v1501, %v1683
      %v1686 = vrcp.pop %v1562
      %v1687 = vmul.f32 %v1562, %v1686
      %v1688 = vsub.f32 1.0, %v1687
      %v1689 = vmul.f32 %v1686, %v1688
      %v1690 = vadd.f32 %v1686, %v1689
      %vm1691 = vweird.f32 %v1562
      %vm1692 = vweird.f32 %v1686
      %vm1693 = vmor %vm1691, %vm1692
      %v1694 = vsel %vm1693, %v1686, %v1690
      %v1695 = vand.u32 2147483647, %v1562
      %vm1696 = vcmp.eq.f32.partialorder %v1695, 8.507059e+37
      %v1697 = vand.u32 %v1562, 2147483648
      %v1698 = vor.u32 1.1754944e-38, %v1697
      %v1699 = vsel %vm1696, %v1698, %v1694
      %v1700 = vmul.f32 %v1503, %v1699
      %v1701 = vmul.f32 %v1505, %v1699
      %v1702 = vrcp.pop %v1565
      %v1703 = vmul.f32 %v1565, %v1702
      %v1704 = vsub.f32 1.0, %v1703
      %v1705 = vmul.f32 %v1702, %v1704
      %v1706 = vadd.f32 %v1702, %v1705
      %vm1707 = vweird.f32 %v1565
      %vm1708 = vweird.f32 %v1702
      %vm1709 = vmor %vm1707, %vm1708
      %v1710 = vsel %vm1709, %v1702, %v1706
      %v1711 = vand.u32 2147483647, %v1565
      %vm1712 = vcmp.eq.f32.partialorder %v1711, 8.507059e+37
      %v1713 = vand.u32 %v1565, 2147483648
      %v1714 = vor.u32 1.1754944e-38, %v1713
      %v1715 = vsel %vm1712, %v1714, %v1710
      %v1716 = vmul.f32 %v1507, %v1715
      %v1717 = vmul.f32 %v1509, %v1715
      %v1718 = vrcp.pop %v1568
      %v1719 = vmul.f32 %v1568, %v1718
      %v1720 = vsub.f32 1.0, %v1719
      %v1721 = vmul.f32 %v1718, %v1720
      %v1722 = vadd.f32 %v1718, %v1721
      %vm1723 = vweird.f32 %v1568
      %vm1724 = vweird.f32 %v1718
      %vm1725 = vmor %vm1723, %vm1724
      %v1726 = vsel %vm1725, %v1718, %v1722
      %v1727 = vand.u32 2147483647, %v1568
      %vm1728 = vcmp.eq.f32.partialorder %v1727, 8.507059e+37
      %v1729 = vand.u32 %v1568, 2147483648
      %v1730 = vor.u32 1.1754944e-38, %v1729
      %v1731 = vsel %vm1728, %v1730, %v1726
      %v1732 = vmul.f32 %v1511, %v1731
      %v1733 = vmul.f32 %v1513, %v1731
      %v1734 = vrcp.pop %v1571
      %v1735 = vmul.f32 %v1571, %v1734
      %v1736 = vsub.f32 1.0, %v1735
      %v1737 = vmul.f32 %v1734, %v1736
      %v1738 = vadd.f32 %v1734, %v1737
      %vm1739 = vweird.f32 %v1571
      %vm1740 = vweird.f32 %v1734
      %vm1741 = vmor %vm1739, %vm1740
      %v1742 = vsel %vm1741, %v1734, %v1738
      %v1743 = vand.u32 2147483647, %v1571
      %vm1744 = vcmp.eq.f32.partialorder %v1743, 8.507059e+37
      %v1745 = vand.u32 %v1571, 2147483648
      %v1746 = vor.u32 1.1754944e-38, %v1745
      %v1747 = vsel %vm1744, %v1746, %v1742
      %v1748 = vmul.f32 %v1515, %v1747
      %v1749 = vmul.f32 %v1517, %v1747
      %v1750 = vrcp.pop %v1574
      %v1751 = vmul.f32 %v1574, %v1750
      %v1752 = vsub.f32 1.0, %v1751
      %v1753 = vmul.f32 %v1750, %v1752
      %v1754 = vadd.f32 %v1750, %v1753
      %vm1755 = vweird.f32 %v1574
      %vm1756 = vweird.f32 %v1750
      %vm1757 = vmor %vm1755, %vm1756
      %v1758 = vsel %vm1757, %v1750, %v1754
      %v1759 = vand.u32 2147483647, %v1574
      %vm1760 = vcmp.eq.f32.partialorder %v1759, 8.507059e+37
      %v1761 = vand.u32 %v1574, 2147483648
      %v1762 = vor.u32 1.1754944e-38, %v1761
      %v1763 = vsel %vm1760, %v1762, %v1758
      %v1764 = vmul.f32 %v1519, %v1763
      %v1765 = vmul.f32 %v1521, %v1763
      %v1766 = vrcp.pop %v1577
      %v1767 = vmul.f32 %v1577, %v1766
      %v1768 = vsub.f32 1.0, %v1767
      %v1769 = vmul.f32 %v1766, %v1768
      %v1770 = vadd.f32 %v1766, %v1769
      %vm1771 = vweird.f32 %v1577
      %vm1772 = vweird.f32 %v1766
      %vm1773 = vmor %vm1771, %vm1772
      %v1774 = vsel %vm1773, %v1766, %v1770
      %v1775 = vand.u32 2147483647, %v1577
      %vm1776 = vcmp.eq.f32.partialorder %v1775, 8.507059e+37
      %v1777 = vand.u32 %v1577, 2147483648
      %v1778 = vor.u32 1.1754944e-38, %v1777
      %v1779 = vsel %vm1776, %v1778, %v1774
      %v1780 = vmul.f32 %v1523, %v1779
      %v1781 = vmul.f32 %v1525, %v1779
      %v1782 = vrcp.pop %v1580
      %v1783 = vmul.f32 %v1580, %v1782
      %v1784 = vsub.f32 1.0, %v1783
      %v1785 = vmul.f32 %v1782, %v1784
      %v1786 = vadd.f32 %v1782, %v1785
      %vm1787 = vweird.f32 %v1580
      %vm1788 = vweird.f32 %v1782
      %vm1789 = vmor %vm1787, %vm1788
      %v1790 = vsel %vm1789, %v1782, %v1786
      %v1791 = vand.u32 2147483647, %v1580
      %vm1792 = vcmp.eq.f32.partialorder %v1791, 8.507059e+37
      %v1793 = vand.u32 %v1580, 2147483648
      %v1794 = vor.u32 1.1754944e-38, %v1793
      %v1795 = vsel %vm1792, %v1794, %v1790
      %v1796 = vmul.f32 %v1527, %v1795
      %v1797 = vmul.f32 %v1529, %v1795
      %v1798 = vrcp.pop %v1583
      %v1799 = vmul.f32 %v1583, %v1798
      %v1800 = vsub.f32 1.0, %v1799
      %v1801 = vmul.f32 %v1798, %v1800
      %v1802 = vadd.f32 %v1798, %v1801
      %vm1803 = vweird.f32 %v1583
      %vm1804 = vweird.f32 %v1798
      %vm1805 = vmor %vm1803, %vm1804
      %v1806 = vsel %vm1805, %v1798, %v1802
      %v1807 = vand.u32 2147483647, %v1583
      %vm1808 = vcmp.eq.f32.partialorder %v1807, 8.507059e+37
      %v1809 = vand.u32 %v1583, 2147483648
      %v1810 = vor.u32 1.1754944e-38, %v1809
      %v1811 = vsel %vm1808, %v1810, %v1806
      %v1812 = vmul.f32 %v1531, %v1811
      %v1813 = vmul.f32 %v1533, %v1811
      %v1814 = vrcp.pop %v1586
      %v1815 = vmul.f32 %v1586, %v1814
      %v1816 = vsub.f32 1.0, %v1815
      %v1817 = vmul.f32 %v1814, %v1816
      %v1818 = vadd.f32 %v1814, %v1817
      %vm1819 = vweird.f32 %v1586
      %vm1820 = vweird.f32 %v1814
      %vm1821 = vmor %vm1819, %vm1820
      %v1822 = vsel %vm1821, %v1814, %v1818
      %v1823 = vand.u32 2147483647, %v1586
      %vm1824 = vcmp.eq.f32.partialorder %v1823, 8.507059e+37
      %v1825 = vand.u32 %v1586, 2147483648
      %v1826 = vor.u32 1.1754944e-38, %v1825
      %v1827 = vsel %vm1824, %v1826, %v1822
      %v1828 = vmul.f32 %v1535, %v1827
      %v1829 = vmul.f32 %v1537, %v1827
      %v1830 = vrcp.pop %v1589
      %v1831 = vmul.f32 %v1589, %v1830
      %v1832 = vsub.f32 1.0, %v1831
      %v1833 = vmul.f32 %v1830, %v1832
      %v1834 = vadd.f32 %v1830, %v1833
      %vm1835 = vweird.f32 %v1589
      %vm1836 = vweird.f32 %v1830
      %vm1837 = vmor %vm1835, %vm1836
      %v1838 = vsel %vm1837, %v1830, %v1834
      %v1839 = vand.u32 2147483647, %v1589
      %vm1840 = vcmp.eq.f32.partialorder %v1839, 8.507059e+37
      %v1841 = vand.u32 %v1589, 2147483648
      %v1842 = vor.u32 1.1754944e-38, %v1841
      %v1843 = vsel %vm1840, %v1842, %v1838
      %v1844 = vmul.f32 %v1539, %v1843
      %v1845 = vmul.f32 %v1541, %v1843
      %v1848 = vrot.slane %v432, 4
      %v1849 = vrot.slane %v455, 4
      %1852 = vmatpush.xpose.msra.mxu0 %v1844
      %1853 = vmatpush.xpose.msra.mxu0 %v1828
      %1854 = vmatpush.xpose.msra.mxu0 %v1812
      %1855 = vmatpush.xpose.msra.mxu0 %v1796
      %1856 = vmatpush.xpose.msra.mxu0 %v1780
      %1857 = vmatpush.xpose.msra.mxu0 %v1764
      %1858 = vmatpush.xpose.msra.mxu0 %v1748
      %1859 = vmatpush.xpose.msra.mxu0 %v1732
      %1860 = vmatpush.xpose.msra.mxu0 %v1716
      %1861 = vmatpush.xpose.msra.mxu0 %v1700
      %1862 = vmatpush.xpose.msra.mxu0 %v1684
      %1863 = vmatpush.xpose.msra.mxu0 %v1668
      %1864 = vmatpush.xpose.msra.mxu0 %v1652
      %1865 = vmatpush.xpose.msra.mxu0 %v1636
      %1866 = vmatpush.xpose.msra.mxu0 %v1620
      %1867 = vmatpush.xpose.msra.mxu0 %v1604
      %1868 = vmatmul.f32.gmra.mxu0 %v1848
      %v1869 = vpop.f32.mrf.mxu0
      %v1870 = vadd.f32 0.0, %v1869
      %1871 = vdwg.mxu0
      %1872 = vmatpush.xpose.msra.mxu0 %v1845
      %1873 = vmatpush.xpose.msra.mxu0 %v1829
      %1874 = vmatpush.xpose.msra.mxu0 %v1813
      %1875 = vmatpush.xpose.msra.mxu0 %v1797
      %1876 = vmatpush.xpose.msra.mxu0 %v1781
      %1877 = vmatpush.xpose.msra.mxu0 %v1765
      %1878 = vmatpush.xpose.msra.mxu0 %v1749
      %1879 = vmatpush.xpose.msra.mxu0 %v1733
      %1880 = vmatpush.xpose.msra.mxu0 %v1717
      %1881 = vmatpush.xpose.msra.mxu0 %v1701
      %1882 = vmatpush.xpose.msra.mxu0 %v1685
      %1883 = vmatpush.xpose.msra.mxu0 %v1669
      %1884 = vmatpush.xpose.msra.mxu0 %v1653
      %1885 = vmatpush.xpose.msra.mxu0 %v1637
      %1886 = vmatpush.xpose.msra.mxu0 %v1621
      %1887 = vmatpush.xpose.msra.mxu0 %v1605
      %1888 = vmatmul.f32.gmra.mxu0 %v1849
      %v1889 = vpop.f32.mrf.mxu0
      %v1890 = vadd.f32 %v1870, %v1889
      %1891 = vdwg.mxu0
      %1892 = vrot.lane.b32.xlu0 %v489, 124
      %v1893 = vpop.permute.xlu0 %1892
      %v1894 = vsel %vm497, %v1893, 0
      %v1897 = vsel %vm546, %v1890, 0
      %1899 = vmatpush.msra.mxu0 0.0
      %1900 = vmatpush.msra.mxu0 0.0
      %1901 = vmatpush.msra.mxu0 0.0
      %1902 = vmatpush.msra.mxu0 0.0
      %1903 = vmatpush.msra.mxu0 0.0
      %1904 = vmatpush.msra.mxu0 0.0
      %1905 = vmatpush.msra.mxu0 0.0
      %1906 = vmatpush.msra.mxu0 0.0
      %1907 = vmatpush.msra.mxu0 0.0
      %1908 = vmatpush.msra.mxu0 0.0
      %1909 = vmatpush.msra.mxu0 0.0
      %1910 = vmatpush.msra.mxu0 0.0
      %1911 = vmatpush.msra.mxu0 0.0
      %1912 = vmatpush.msra.mxu0 0.0
      %1913 = vmatpush.msra.mxu0 0.0
      %1914 = vmatpush.msra.mxu0 %v1897
      %1915 = vmatmul.f32.gmra.mxu0 %v1894
      %v1916 = vpop.f32.mrf.mxu0
      %v1917 = vadd.f32 0.0, %v1916
      %1918 = vdwg.mxu0
      %v1919 = vadd.f32 %v1197, %v1917
      %1920 = vst [vmem:[%s356] sm:$0xff] %v1919
      %p1921 = scmp.lt.s32.totalorder %s23, 1
      %s1922 = scalar_select %p1921, %s23, 1
      %p1923 = scmp.lt.s32.totalorder %s24, 1
      %s1924 = scalar_select %p1923, %s24, 1
      %s1925 = smul.addr %s1922, 2
      %s1926 = sadd.s32 %s1924, %s1925
      %s1927 = smul.addr %s1926, 8
      %s1928 = scalar_lea.vmem %s8, %s1927
      // Predicated region
      $region53: #{attention_block.1} parent=51 // pred_check
        %p1929 = pneg %p231
      $region54: #{attention_block.1} parent=51 // pred_check_branch
        %1931 = sbr.rel (%p1929) target = $region56
      $region55: #{attention_block.1} parent=51 // pred_region
        _
      $region56: #{attention_block.1} parent=51 // pred_fallthru
        _
    $region52: #{attention_block.1} parent=5 // pred_fallthru
      _
    %p1932 = scmp.le.s32.totalorder 2, %s14
    // Predicated region
    $region57: #{attention_block.1} parent=5 // pred_check
      %p1933 = pneg %p1932
    $region58: #{attention_block.1} parent=5 // pred_check_branch
      %1935 = sbr.rel (%p1933) target = $region60
    $region59: #{attention_block.1} parent=5 // pred_region
      %s1936 = ssub.s32 %s14, 2
      // Predicated region
      $region61: #{attention_block.1} parent=59 // pred_check
        %p1937 = pneg %p237
      $region62: #{attention_block.1} parent=59 // pred_check_branch
        %1939 = sbr.rel (%p1937) target = $region64
      $region63: #{attention_block.1} parent=59 // pred_region
        %p1940 = scmp.lt.s32.totalorder %s25, 1
        %s1941 = scalar_select %p1940, %s25, 1
        %p1942 = scmp.lt.s32.totalorder %s26, 1
        %s1943 = scalar_select %p1942, %s26, 1
        %s1944 = smul.addr %s1941, 2
        %s1945 = sadd.s32 %s1943, %s1944
        %s1946 = smul.addr %s1945, 8
        %s1947 = scalar_lea.vmem %s8, %s1946
      $region64: #{attention_block.1} parent=59 // pred_fallthru
        _
    $region60: #{attention_block.1} parent=5 // pred_fallthru
      _
  $region6: #{attention_block.1} parent=0 // loop_footer
    %s18 = sadd.s32 1, %s14
  $region7: #{attention_block.1} parent=0 // loop_footer_branch
    %13 = sbr.rel target = $region3
  $region8: #{attention_block.1} parent=0 // loop_exit
    _

</llo_original>
